<compile_context>
chip_gen: v5e
topology: v5e:2x2
jax: 0.10.0
libtpu: 0.0.40
codegen_flags: <defaults>
</compile_context>

<pallas_src>
import jax
import jax.numpy as jnp
import numpy as np
from jax import lax
from jax.experimental import pallas as pl
from jax.experimental.pallas import tpu as pltpu

THRESH = 0.5              # spiking threshold of the Heaviside forward of ActFun
POOL_SUM_THRESH = THRESH * 25.0   # compare the raw 5x5 window sum (avg > 0.5 <=> sum > 12.5)
BN_EPS = 1e-5             # torch BatchNorm2d default eps
NC_PAD = 128              # lane-dense classifier output width


def _round_up(n, m):
    return ((n + m - 1) // m) * m


# --------------------------------------------------------------------------- kernel
def aux_head_kernel(spike0_ref, w1_ref, t1_ref, w2_ref, t2_ref, wc_ref, bc_ref, out_ref):
    """One batch tile of the AuxiliaryHeadCIFAR forward; three lane-dense MXU pushes.

    spike0_ref: (TN, 4*C)   bf16 pooled spikes, columns ordered c*4 + p (p = oh*2+ow)
    w1_ref    : (4*C, 512)  bf16 striped 1x1-conv weight, BN1 scale folded
    t1_ref    : (1, 512)    f32  per-column threshold THRESH - b1 (BN1 shift folded)
    w2_ref    : (512, 768)  bf16 flattened 2x2-conv weight (rows = p*128 + cin), BN2 scale folded
    t2_ref    : (1, 768)    f32  per-column threshold THRESH - b2
    wc_ref    : (768, 128)  bf16 classifier weight^T, zero-padded to 128 columns
    bc_ref    : (1, 128)    f32  classifier bias, zero-padded
    out_ref   : (TN, 128)   f32  padded logits
    """
    # conv1 (1x1, no bias) + folded BatchNorm: single block-diagonal K=32 MXU push,
    # Heaviside against the bias-folded threshold (no f32 add needed).
    mem1 = jnp.dot(spike0_ref[...], w1_ref[...], preferred_element_type=jnp.float32)
    spike1 = (mem1 > t1_ref[...]).astype(jnp.bfloat16)
    # conv2 (2x2 over the 2x2 pooled map) + folded BatchNorm: single K=512 MXU push.
    mem2 = jnp.dot(spike1, w2_ref[...], preferred_element_type=jnp.float32)
    spike2 = (mem2 > t2_ref[...]).astype(jnp.bfloat16)
    # classifier (lane-dense 128-wide padded output).
    out_ref[...] = jnp.dot(spike2, wc_ref[...], preferred_element_type=jnp.float32) + bc_ref[...]


# ---------------------------------------------------------------- one-time packing
def pack_params(params, C):
    """Fold BatchNorm scales into conv weights (bf16), shifts into thresholds, and
    pack/pad everything into kernel layout.  Call ONCE per weight update."""
    c1 = params["w1"].shape[0]          # 128
    c2 = params["w2"].shape[0]          # 768
    num_classes = params["wc"].shape[0]

    s1 = params["g1"] / jnp.sqrt(params["v1"] + BN_EPS)
    b1 = params["be1"] - params["m1"] * s1
    w1_eff = (params["w1"].reshape(c1, C) * s1[:, None]).astype(jnp.bfloat16)   # (c1, C)

    s2 = params["g2"] / jnp.sqrt(params["v2"] + BN_EPS)
    b2 = params["be2"] - params["m2"] * s2
    w2_eff = (params["w2"] * s2[:, None, None, None]).astype(jnp.bfloat16)      # (c2, c1, 2, 2)

    # conv1 as a striped block matrix matching the natural (N,C,2,2)->(N,4C) reshape:
    # input row index r = c*4 + p  ->  output column p*c1 + cout.
    w1t = w1_eff.T                                                              # (C, c1)
    w1bd = jnp.zeros((4 * C, 4 * c1), jnp.bfloat16)
    for p in range(4):
        w1bd = w1bd.at[p::4, p * c1:(p + 1) * c1].set(w1t)
    t1 = jnp.tile((THRESH - b1).astype(jnp.float32), 4).reshape(1, 4 * c1)      # col = p*c1+cout

    # conv2 flattened: row index = p*c1 + cin with p = kh*2 + kw.
    w2f = jnp.transpose(w2_eff, (2, 3, 1, 0)).reshape(4 * c1, c2)               # (512, 768)
    t2 = (THRESH - b2).astype(jnp.float32).reshape(1, c2)

    # classifier, zero-padded to 128 lanes.
    wct = jnp.zeros((c2, NC_PAD), jnp.bfloat16).at[:, :num_classes].set(
        params["wc"].astype(jnp.bfloat16).T)
    bcp = jnp.zeros((1, NC_PAD), jnp.float32).at[0, :num_classes].set(params["bc"])

    return dict(w1bd=w1bd, t1=t1, w2f=w2f, t2=t2, wct=wct, bc=bcp,
                C=C, c1=c1, c2=c2, num_classes=num_classes)


# --------------------------------------------------------------------- batch tiling
def _choose_batch_tile(N):
    """Pick (TN, N_pad): TN multiple of 8, minimal padding, >=2 grid steps for
    mid/large batches so the 'parallel' axis can shard across 2 TensorCores (v7x)."""
    n8 = _round_up(max(N, 8), 8)
    if n8 <= 1024:
        if n8 >= 512:                       # split into ~2 steps (megacore-friendly)
            tn = _round_up((n8 + 1) // 2, 8)
            return tn, _round_up(n8, tn)
        return n8, n8                       # tiny batch: single tile, zero waste
    # large batch: pick from {1024,512,256,128} minimizing padding (prefer larger tile)
    best_tn, best_pad = 1024, _round_up(n8, 1024)
    for tn in (512, 256, 128):
        npad = _round_up(n8, tn)
        if npad < best_pad:
            best_tn, best_pad = tn, npad
    return best_tn, best_pad


# -------------------------------------------------------------------------- forward
def auxiliary_head_cifar(x_nchw, packed, *, batch_tile=None):
    """Forward pass.  `packed` is the output of pack_params (built once, reused)."""
    N, C, H, W = x_nchw.shape
    assert H == 8 and W == 8, "AuxiliaryHeadCIFAR assumes an 8x8 input"
    assert C == packed["C"]
    c1, c2, num_classes = packed["c1"], packed["c2"], packed["num_classes"]

    # SpikingAvgPool2d(5, stride=3) + Heaviside, done as a raw window SUM on the
    # input dtype (no f32 upcast, no 1/25) -> (N, 4C) bf16 spikes, column = c*4 + p.
    zero = jnp.zeros((), x_nchw.dtype)
    pooled_sum = lax.reduce_window(x_nchw, zero, lax.add,
                                   (1, 1, 5, 5), (1, 1, 3, 3), "VALID")      # (N, C, 2, 2)
    spike0 = (pooled_sum > jnp.asarray(POOL_SUM_THRESH, pooled_sum.dtype)) \
        .astype(jnp.bfloat16).reshape(N, 4 * C)

    # batch tiling (weights stay resident across the 1-D grid)
    if batch_tile is not None:
        TN = _round_up(max(int(batch_tile), 8), 8)   # enforce (8,128) sublane rule
        N_pad = _round_up(N, TN)
    else:
        TN, N_pad = _choose_batch_tile(N)
    if N_pad != N:
        spike0 = jnp.pad(spike0, ((0, N_pad - N), (0, 0)))

    out = pl.pallas_call(
        aux_head_kernel,
        out_shape=jax.ShapeDtypeStruct((N_pad, NC_PAD), jnp.float32),
        grid_spec=pltpu.PrefetchScalarGridSpec(
            num_scalar_prefetch=0,
            grid=(N_pad // TN,),
            in_specs=[
                pl.BlockSpec((TN, 4 * C), lambda i: (i, 0)),
                pl.BlockSpec((4 * C, 4 * c1), lambda i: (0, 0)),
                pl.BlockSpec((1, 4 * c1), lambda i: (0, 0)),
                pl.BlockSpec((4 * c1, c2), lambda i: (0, 0)),
                pl.BlockSpec((1, c2), lambda i: (0, 0)),
                pl.BlockSpec((c2, NC_PAD), lambda i: (0, 0)),
                pl.BlockSpec((1, NC_PAD), lambda i: (0, 0)),
            ],
            out_specs=pl.BlockSpec((TN, NC_PAD), lambda i: (i, 0)),
        ),
        compiler_params=pltpu.CompilerParams(dimension_semantics=("parallel",)),
    )(spike0, packed["w1bd"], packed["t1"], packed["w2f"], packed["t2"],
      packed["wct"], packed["bc"])

    return out[:N, :num_classes]


# ------------------------------------------------------------------------ reference
def reference_forward(x, params):
    """Pure-JAX mirror of the PyTorch forward (NCHW), for validation.

    Uses the same BN-scale-folded, bf16-quantized effective weights and the same
    bias-folded thresholds as the kernel, so the Heaviside comparisons see the same
    rounding (spikes are exact {0,1}; only MXU vs. XLA accumulation order differs)."""
    N, C = x.shape[0], x.shape[1]
    c1 = params["w1"].shape[0]
    c2 = params["w2"].shape[0]

    s1 = params["g1"] / jnp.sqrt(params["v1"] + BN_EPS)
    b1 = params["be1"] - params["m1"] * s1
    s2 = params["g2"] / jnp.sqrt(params["v2"] + BN_EPS)
    b2 = params["be2"] - params["m2"] * s2

    w1 = (params["w1"].reshape(c1, C) * s1[:, None]).astype(jnp.bfloat16) \
        .astype(jnp.float32).reshape(c1, C, 1, 1)
    w2 = (params["w2"] * s2[:, None, None, None]).astype(jnp.bfloat16).astype(jnp.float32)
    wc = params["wc"].astype(jnp.bfloat16).astype(jnp.float32)

    pooled = lax.reduce_window(x.astype(jnp.float32), 0.0, lax.add,
                               (1, 1, 5, 5), (1, 1, 3, 3), "VALID") / 25.0
    sp0 = (pooled > THRESH).astype(jnp.float32)
    y1 = lax.conv_general_dilated(sp0, w1, (1, 1), "VALID",
                                  dimension_numbers=("NCHW", "OIHW", "NCHW"),
                                  precision=lax.Precision.HIGHEST)
    sp1 = (y1 > (THRESH - b1).reshape(1, -1, 1, 1)).astype(jnp.float32)
    y2 = lax.conv_general_dilated(sp1, w2, (1, 1), "VALID",
                                  dimension_numbers=("NCHW", "OIHW", "NCHW"),
                                  precision=lax.Precision.HIGHEST)
    sp2 = (y2 > (THRESH - b2).reshape(1, -1, 1, 1)).astype(jnp.float32)   # (N, 768, 1, 1)
    feat = sp2.reshape(N, c2)                                             # -> classifier
    return jnp.dot(feat, wc.T, precision=lax.Precision.HIGHEST) + params["bc"]


if __name__ == "__main__":
    key = jax.random.PRNGKey(0)
    N, C, H, W = 2, 8, 8, 8        # "assuming input size 8x8"
    num_classes = 10
    ks = jax.random.split(key, 13)

    # input is a spike map ({0,1}) as produced by the preceding SNN cell
    x = jax.random.bernoulli(ks[0], 0.6, (N, C, H, W)).astype(jnp.float32)

    params = dict(
        w1=0.3 * jax.random.normal(ks[1], (128, C, 1, 1), jnp.float32),
        g1=1.0 + 0.1 * jax.random.normal(ks[2], (128,), jnp.float32),
        be1=0.1 * jax.random.normal(ks[3], (128,), jnp.float32),
        m1=0.1 * jax.random.normal(ks[4], (128,), jnp.float32),
        v1=jax.random.uniform(ks[5], (128,), jnp.float32, 0.5, 1.5),
        w2=(1.0 / np.sqrt(512.0)) * jax.random.normal(ks[6], (768, 128, 2, 2), jnp.float32),
        g2=1.0 + 0.1 * jax.random.normal(ks[7], (768,), jnp.float32),
        be2=0.1 * jax.random.normal(ks[8], (768,), jnp.float32),
        m2=0.1 * jax.random.normal(ks[9], (768,), jnp.float32),
        v2=jax.random.uniform(ks[10], (768,), jnp.float32, 0.5, 1.5),
        wc=0.01 * jax.random.normal(ks[11], (num_classes, 768), jnp.float32),
        bc=0.1 * jax.random.normal(ks[12], (num_classes,), jnp.float32),
    )

    packed = jax.tree_util.tree_map(jax.block_until_ready,
                                    pack_params(params, C))     # one-time packing
    out = jax.block_until_ready(auxiliary_head_cifar(x, packed))
    ref = jax.block_until_ready(reference_forward(x, params))
    assert out.shape == (N, num_classes)
    np.testing.assert_allclose(np.asarray(out), np.asarray(ref), rtol=0, atol=5e-3)
    print("KERNEL_OK")
</pallas_src>

<mosaic_0001>
module attributes {stable_mosaic.version = 11 : i64} {
  func.func @aux_head_kernel(%arg0: i32, %arg1: memref<8x32xbf16, #tpu.memory_space<vmem>>, %arg2: memref<32x512xbf16, #tpu.memory_space<vmem>>, %arg3: memref<1x512xf32, #tpu.memory_space<vmem>>, %arg4: memref<512x768xbf16, #tpu.memory_space<vmem>>, %arg5: memref<1x768xf32, #tpu.memory_space<vmem>>, %arg6: memref<768x128xbf16, #tpu.memory_space<vmem>>, %arg7: memref<1x128xf32, #tpu.memory_space<vmem>>, %arg8: memref<8x128xf32, #tpu.memory_space<vmem>>) attributes {dimension_semantics = [#tpu.dimension_semantics<parallel>], iteration_bounds = array<i64: 1>, scalar_prefetch = 0 : i64, scratch_operands = 0 : i64, tpu.core_type = #tpu.core_type<tc>, window_params = [{transform_indices = @transform_0, window_bounds = array<i64: 8, 32>}, {pipeline_mode = #tpu.pipeline_mode<synchronous>, transform_indices = @transform_1, window_bounds = array<i64: 32, 512>}, {pipeline_mode = #tpu.pipeline_mode<synchronous>, transform_indices = @transform_2, window_bounds = array<i64: 1, 512>}, {pipeline_mode = #tpu.pipeline_mode<synchronous>, transform_indices = @transform_3, window_bounds = array<i64: 512, 768>}, {pipeline_mode = #tpu.pipeline_mode<synchronous>, transform_indices = @transform_4, window_bounds = array<i64: 1, 768>}, {pipeline_mode = #tpu.pipeline_mode<synchronous>, transform_indices = @transform_5, window_bounds = array<i64: 768, 128>}, {pipeline_mode = #tpu.pipeline_mode<synchronous>, transform_indices = @transform_6, window_bounds = array<i64: 1, 128>}, {transform_indices = @transform_7, window_bounds = array<i64: 8, 128>}]} {
    %c0 = arith.constant 0 : index
    %c0_0 = arith.constant 0 : index
    %0 = vector.load %arg1[%c0, %c0_0] : memref<8x32xbf16, #tpu.memory_space<vmem>>, vector<8x32xbf16>
    %c0_1 = arith.constant 0 : index
    %c0_2 = arith.constant 0 : index
    %1 = vector.load %arg2[%c0_1, %c0_2] : memref<32x512xbf16, #tpu.memory_space<vmem>>, vector<32x512xbf16>
    %cst = arith.constant dense<0.000000e+00> : vector<8x512xf32>
    %2 = tpu.matmul %0, %1, %cst {dimension_numbers = #tpu.dot_dimension_numbers<[1], [0], [0], [1], [0, 0, 1, 1], [], []>} : vector<8x32xbf16>, vector<32x512xbf16>, vector<8x512xf32> -> vector<8x512xf32>
    %c0_3 = arith.constant 0 : index
    %c0_4 = arith.constant 0 : index
    %3 = vector.load %arg3[%c0_3, %c0_4] : memref<1x512xf32, #tpu.memory_space<vmem>>, vector<1x512xf32>
    %4 = vector.broadcast %3 : vector<1x512xf32> to vector<8x512xf32>
    %5 = arith.cmpf ogt, %2, %4 : vector<8x512xf32>
    %6 = arith.extui %5 : vector<8x512xi1> to vector<8x512xi32>
    %7 = arith.sitofp %6 : vector<8x512xi32> to vector<8x512xf32>
    %8 = arith.truncf %7 : vector<8x512xf32> to vector<8x512xbf16>
    %c0_5 = arith.constant 0 : index
    %c0_6 = arith.constant 0 : index
    %9 = vector.load %arg4[%c0_5, %c0_6] : memref<512x768xbf16, #tpu.memory_space<vmem>>, vector<512x768xbf16>
    %cst_7 = arith.constant dense<0.000000e+00> : vector<8x768xf32>
    %10 = tpu.matmul %8, %9, %cst_7 {dimension_numbers = #tpu.dot_dimension_numbers<[1], [0], [0], [1], [0, 0, 1, 1], [], []>} : vector<8x512xbf16>, vector<512x768xbf16>, vector<8x768xf32> -> vector<8x768xf32>
    %c0_8 = arith.constant 0 : index
    %c0_9 = arith.constant 0 : index
    %11 = vector.load %arg5[%c0_8, %c0_9] : memref<1x768xf32, #tpu.memory_space<vmem>>, vector<1x768xf32>
    %12 = vector.broadcast %11 : vector<1x768xf32> to vector<8x768xf32>
    %13 = arith.cmpf ogt, %10, %12 : vector<8x768xf32>
    %14 = arith.extui %13 : vector<8x768xi1> to vector<8x768xi32>
    %15 = arith.sitofp %14 : vector<8x768xi32> to vector<8x768xf32>
    %16 = arith.truncf %15 : vector<8x768xf32> to vector<8x768xbf16>
    %c0_10 = arith.constant 0 : index
    %c0_11 = arith.constant 0 : index
    %17 = vector.load %arg6[%c0_10, %c0_11] : memref<768x128xbf16, #tpu.memory_space<vmem>>, vector<768x128xbf16>
    %cst_12 = arith.constant dense<0.000000e+00> : vector<8x128xf32>
    %18 = tpu.matmul %16, %17, %cst_12 {dimension_numbers = #tpu.dot_dimension_numbers<[1], [0], [0], [1], [0, 0, 1, 1], [], []>} : vector<8x768xbf16>, vector<768x128xbf16>, vector<8x128xf32> -> vector<8x128xf32>
    %c0_13 = arith.constant 0 : index
    %c0_14 = arith.constant 0 : index
    %19 = vector.load %arg7[%c0_13, %c0_14] : memref<1x128xf32, #tpu.memory_space<vmem>>, vector<1x128xf32>
    %20 = vector.broadcast %19 : vector<1x128xf32> to vector<8x128xf32>
    %21 = arith.addf %18, %20 : vector<8x128xf32>
    %c0_15 = arith.constant 0 : index
    %c0_16 = arith.constant 0 : index
    %22 = vector.load %arg8[%c0_15, %c0_16] : memref<8x128xf32, #tpu.memory_space<vmem>>, vector<8x128xf32>
    tpu.vector_store %arg8[%c0_15, %c0_16], %21 {strides = array<i32>} : memref<8x128xf32, #tpu.memory_space<vmem>>, vector<8x128xf32>,
    return
  }
  func.func @transform_0(%arg0: i32) -> (i32, i32) {
    %c0_i32 = arith.constant 0 : i32
    %c0_i32_0 = arith.constant 0 : i32
    return %arg0, %c0_i32 : i32, i32
  }
  func.func @transform_1(%arg0: i32) -> (i32, i32) {
    %c0_i32 = arith.constant 0 : i32
    %c0_i32_0 = arith.constant 0 : i32
    %c0_i32_1 = arith.constant 0 : i32
    return %c0_i32, %c0_i32_0 : i32, i32
  }
  func.func @transform_2(%arg0: i32) -> (i32, i32) {
    %c0_i32 = arith.constant 0 : i32
    %c0_i32_0 = arith.constant 0 : i32
    %c0_i32_1 = arith.constant 0 : i32
    return %c0_i32, %c0_i32_0 : i32, i32
  }
  func.func @transform_3(%arg0: i32) -> (i32, i32) {
    %c0_i32 = arith.constant 0 : i32
    %c0_i32_0 = arith.constant 0 : i32
    %c0_i32_1 = arith.constant 0 : i32
    return %c0_i32, %c0_i32_0 : i32, i32
  }
  func.func @transform_4(%arg0: i32) -> (i32, i32) {
    %c0_i32 = arith.constant 0 : i32
    %c0_i32_0 = arith.constant 0 : i32
    %c0_i32_1 = arith.constant 0 : i32
    return %c0_i32, %c0_i32_0 : i32, i32
  }
  func.func @transform_5(%arg0: i32) -> (i32, i32) {
    %c0_i32 = arith.constant 0 : i32
    %c0_i32_0 = arith.constant 0 : i32
    %c0_i32_1 = arith.constant 0 : i32
    return %c0_i32, %c0_i32_0 : i32, i32
  }
  func.func @transform_6(%arg0: i32) -> (i32, i32) {
    %c0_i32 = arith.constant 0 : i32
    %c0_i32_0 = arith.constant 0 : i32
    %c0_i32_1 = arith.constant 0 : i32
    return %c0_i32, %c0_i32_0 : i32, i32
  }
  func.func @transform_7(%arg0: i32) -> (i32, i32) {
    %c0_i32 = arith.constant 0 : i32
    %c0_i32_0 = arith.constant 0 : i32
    return %arg0, %c0_i32 : i32, i32
  }
}

</mosaic_0001>

<llo_original>
// kernel: tpu_custom_call.1
$region0: #{tpu_custom_call.1}
  #allocation0 [shape = 'u32[]', space=smem, size = 0x4, offset = 0x4, fixed_abs, tag = 'smem constant byte address 0x4 - core index']
  #allocation1 [shape = 'u32[72,128]{1,0:T(1,128)}', space=vmem, size = 0x9000, scoped, tag = 'internal scratch']
  %s0 = inlined_call_operand.hbm [shape: bf16[8,32], index: 0, kind: input, shape index: {}]
  %s1 = inlined_call_operand.hbm [shape: bf16[32,512], index: 1, kind: input, shape index: {}]
  %s2 = inlined_call_operand.hbm [shape: f32[1,512], index: 2, kind: input, shape index: {}]
  %s3 = inlined_call_operand.hbm [shape: bf16[512,768], index: 3, kind: input, shape index: {}]
  %s4 = inlined_call_operand.hbm [shape: f32[1,768], index: 4, kind: input, shape index: {}]
  %s5 = inlined_call_operand.hbm [shape: bf16[768,128], index: 5, kind: input, shape index: {}]
  %s6 = inlined_call_operand.vmem [shape: f32[1,128], index: 6, kind: input, shape index: {}]
  %s7 = inlined_call_operand.hbm [shape: f32[8,128], index: 7, kind: output, shape index: {}]
  %s8 = sld [smem:[#allocation0]]
  $region62: #{tpu_custom_call.1} parent=0
    _
  %s10 = ssub.s32 1, %s8
  %s11 = scalar_select 0, %s10, %s8
  $region1: #{tpu_custom_call.1} parent=0
    #allocation2 [shape = 'u8[2048]{0}', space=vmem, size = 0x800, scoped, tag = 'input window, operand 0, single buffered']
    #allocation3 [shape = 's32[1]{0}', space=sflag, size = 0x4, scoped, tag = 'scoped memory for tpu_custom_call.1']
    #allocation4 [shape = 's32[1]{0}', space=sflag, size = 0x4, scoped, tag = 'scoped memory for tpu_custom_call.1']
    #allocation5 [shape = 'u8[32768]{0}', space=vmem, size = 0x8000, scoped, tag = 'input window, operand 1, single buffered']
    #allocation6 [shape = 's32[1]{0}', space=sflag, size = 0x4, scoped, tag = 'scoped memory for tpu_custom_call.1']
    #allocation7 [shape = 'u8[2048]{0}', space=vmem, size = 0x800, scoped, tag = 'input window, operand 2, single buffered']
    #allocation8 [shape = 'u8[786432]{0}', space=vmem, size = 0xc0000, scoped, tag = 'input window, operand 3, single buffered']
    #allocation9 [shape = 's32[1]{0}', space=sflag, size = 0x4, scoped, tag = 'scoped memory for tpu_custom_call.1']
    #allocation10 [shape = 'u8[3072]{0}', space=vmem, size = 0xc00, scoped, tag = 'input window, operand 4, single buffered']
    #allocation11 [shape = 'u8[196608]{0}', space=vmem, size = 0x30000, scoped, tag = 'input window, operand 5, single buffered']
    #allocation12 [shape = 's32[1]{0}', space=sflag, size = 0x4, scoped, tag = 'scoped memory for tpu_custom_call.1']
    #allocation13 [shape = 'u8[4096]{0}', space=vmem, size = 0x1000, scoped, tag = 'output window, operand 0, single buffered']
    %12 = vsyncpa [#allocation3], 0
    %13 = vsyncpa [#allocation6], 0
    %14 = vsyncpa [#allocation9], 0
    %15 = vsyncpa [#allocation12], 0
    %16 = vsyncpa [#allocation4], 0
    // Predicated region
    $region2: #{tpu_custom_call.1} parent=1 // pred_check
      _
    $region3: #{tpu_custom_call.1} parent=1 // pred_check_branch
      %18 = sbr.rel (0) target = $region5
    $region4: #{tpu_custom_call.1} parent=1 // pred_region
      %20 = vsyncadd [#allocation3], 0
      %s22 = sshll.u32 %s0, 4
      %s23 = int_to_ptr.hbm [resolvable:$true] %s22
      %s24 = sshll.u32 [#allocation2], 4
      %s25 = int_to_ptr.vmem [resolvable:$true] %s24
      %27 = dma.hbm_to_vmem [thread:$0]  %s23, 64, %s25, [#allocation3]
    $region5: #{tpu_custom_call.1} parent=1 // pred_fallthru
      _
    // Predicated region
    $region6: #{tpu_custom_call.1} parent=1 // pred_check
      _
    $region7: #{tpu_custom_call.1} parent=1 // pred_check_branch
      %29 = sbr.rel (0) target = $region9
    $region8: #{tpu_custom_call.1} parent=1 // pred_region
      %31 = vsyncadd [#allocation6], 0
      %s32 = sshll.u32 %s1, 4
      %s33 = int_to_ptr.hbm [resolvable:$true] %s32
      %s34 = sshll.u32 [#allocation5], 4
      %s35 = int_to_ptr.vmem [resolvable:$true] %s34
      %40 = dma.hbm_to_vmem [thread:$0]  %s33, 1024, %s35, [#allocation6], 256, 256, 16
    $region9: #{tpu_custom_call.1} parent=1 // pred_fallthru
      _
    // Predicated region
    $region10: #{tpu_custom_call.1} parent=1 // pred_check
      _
    $region11: #{tpu_custom_call.1} parent=1 // pred_check_branch
      %42 = sbr.rel (0) target = $region13
    $region12: #{tpu_custom_call.1} parent=1 // pred_region
      %44 = vsyncadd [#allocation6], 0
      %s46 = sshll.u32 %s2, 4
      %s47 = int_to_ptr.hbm [resolvable:$true] %s46
      %s48 = sshll.u32 [#allocation7], 4
      %s49 = int_to_ptr.vmem [resolvable:$true] %s48
      %51 = dma.hbm_to_vmem [thread:$0]  %s47, 64, %s49, [#allocation6]
    $region13: #{tpu_custom_call.1} parent=1 // pred_fallthru
      _
    // Predicated region
    $region14: #{tpu_custom_call.1} parent=1 // pred_check
      _
    $region15: #{tpu_custom_call.1} parent=1 // pred_check_branch
      %53 = sbr.rel (0) target = $region17
    $region16: #{tpu_custom_call.1} parent=1 // pred_region
      %55 = vsyncadd [#allocation9], 0
      %s56 = sshll.u32 %s3, 4
      %s57 = int_to_ptr.hbm [resolvable:$true] %s56
      %s58 = sshll.u32 [#allocation8], 4
      %s59 = int_to_ptr.vmem [resolvable:$true] %s58
      %64 = dma.hbm_to_vmem [thread:$0]  %s57, 24576, %s59, [#allocation9], 384, 384, 24
    $region17: #{tpu_custom_call.1} parent=1 // pred_fallthru
      _
    // Predicated region
    $region18: #{tpu_custom_call.1} parent=1 // pred_check
      _
    $region19: #{tpu_custom_call.1} parent=1 // pred_check_branch
      %66 = sbr.rel (0) target = $region21
    $region20: #{tpu_custom_call.1} parent=1 // pred_region
      %68 = vsyncadd [#allocation9], 0
      %s70 = sshll.u32 %s4, 4
      %s71 = int_to_ptr.hbm [resolvable:$true] %s70
      %s72 = sshll.u32 [#allocation10], 4
      %s73 = int_to_ptr.vmem [resolvable:$true] %s72
      %75 = dma.hbm_to_vmem [thread:$0]  %s71, 96, %s73, [#allocation9]
    $region21: #{tpu_custom_call.1} parent=1 // pred_fallthru
      _
    // Predicated region
    $region22: #{tpu_custom_call.1} parent=1 // pred_check
      _
    $region23: #{tpu_custom_call.1} parent=1 // pred_check_branch
      %77 = sbr.rel (0) target = $region25
    $region24: #{tpu_custom_call.1} parent=1 // pred_region
      %79 = vsyncadd [#allocation12], 0
      %s80 = sshll.u32 %s5, 4
      %s81 = int_to_ptr.hbm [resolvable:$true] %s80
      %s82 = sshll.u32 [#allocation11], 4
      %s83 = int_to_ptr.vmem [resolvable:$true] %s82
      %88 = dma.hbm_to_vmem [thread:$0]  %s81, 6144, %s83, [#allocation12], 64, 64, 4
    $region25: #{tpu_custom_call.1} parent=1 // pred_fallthru
      _
    // Predicated region
    $region26: #{tpu_custom_call.1} parent=1 // pred_check
      _
    $region27: #{tpu_custom_call.1} parent=1 // pred_check_branch
      %90 = sbr.rel (0) target = $region29
    $region28: #{tpu_custom_call.1} parent=1 // pred_region
      _
    $region29: #{tpu_custom_call.1} parent=1 // pred_fallthru
      _
    // Predicated region
    $region30: #{tpu_custom_call.1} parent=1 // pred_check
      _
    $region31: #{tpu_custom_call.1} parent=1 // pred_check_branch
      %92 = sbr.rel (0) target = $region33
    $region32: #{tpu_custom_call.1} parent=1 // pred_region
      %94 = dma.done [#allocation3], 64
    $region33: #{tpu_custom_call.1} parent=1 // pred_fallthru
      _
    // Predicated region
    $region34: #{tpu_custom_call.1} parent=1 // pred_check
      _
    $region35: #{tpu_custom_call.1} parent=1 // pred_check_branch
      %96 = sbr.rel (0) target = $region37
    $region36: #{tpu_custom_call.1} parent=1 // pred_region
      %98 = dma.done [#allocation6], 1024
    $region37: #{tpu_custom_call.1} parent=1 // pred_fallthru
      _
    // Predicated region
    $region38: #{tpu_custom_call.1} parent=1 // pred_check
      _
    $region39: #{tpu_custom_call.1} parent=1 // pred_check_branch
      %100 = sbr.rel (0) target = $region41
    $region40: #{tpu_custom_call.1} parent=1 // pred_region
      %102 = dma.done [#allocation6], 64
    $region41: #{tpu_custom_call.1} parent=1 // pred_fallthru
      _
    // Predicated region
    $region42: #{tpu_custom_call.1} parent=1 // pred_check
      _
    $region43: #{tpu_custom_call.1} parent=1 // pred_check_branch
      %104 = sbr.rel (0) target = $region45
    $region44: #{tpu_custom_call.1} parent=1 // pred_region
      %106 = dma.done [#allocation9], 24576
    $region45: #{tpu_custom_call.1} parent=1 // pred_fallthru
      _
    // Predicated region
    $region46: #{tpu_custom_call.1} parent=1 // pred_check
      _
    $region47: #{tpu_custom_call.1} parent=1 // pred_check_branch
      %108 = sbr.rel (0) target = $region49
    $region48: #{tpu_custom_call.1} parent=1 // pred_region
      %110 = dma.done [#allocation9], 96
    $region49: #{tpu_custom_call.1} parent=1 // pred_fallthru
      _
    // Predicated region
    $region50: #{tpu_custom_call.1} parent=1 // pred_check
      _
    $region51: #{tpu_custom_call.1} parent=1 // pred_check_branch
      %112 = sbr.rel (0) target = $region53
    $region52: #{tpu_custom_call.1} parent=1 // pred_region
      %114 = dma.done [#allocation12], 6144
    $region53: #{tpu_custom_call.1} parent=1 // pred_fallthru
      _
    %v116 = vld [vmem:[#allocation2] sm:$0xf]
    %v117 = vld [vmem:[#allocation5] sm:$0xff]
    %v118 = vld [vmem:[#allocation5 + $0x8] sm:$0xff]
    %v119 = vld [vmem:[#allocation5 + $0x10] sm:$0xff]
    %v120 = vld [vmem:[#allocation5 + $0x18] sm:$0xff]
    %v121 = vld [vmem:[#allocation5 + $0x20] sm:$0xff]
    %v122 = vld [vmem:[#allocation5 + $0x28] sm:$0xff]
    %v123 = vld [vmem:[#allocation5 + $0x30] sm:$0xff]
    %v124 = vld [vmem:[#allocation5 + $0x38] sm:$0xff]
    %v133 = vunpack.c.l.b16 %v117
    %v134 = vunpack.c.h.b16 %v117
    %v135 = vunpack.c.l.b16 %v118
    %v136 = vunpack.c.h.b16 %v118
    %v137 = vunpack.c.l.b16 %v119
    %v138 = vunpack.c.h.b16 %v119
    %v139 = vunpack.c.l.b16 %v120
    %v140 = vunpack.c.h.b16 %v120
    %v141 = vunpack.c.l.b16 %v121
    %v142 = vunpack.c.h.b16 %v121
    %v143 = vunpack.c.l.b16 %v122
    %v144 = vunpack.c.h.b16 %v122
    %v145 = vunpack.c.l.b16 %v123
    %v146 = vunpack.c.h.b16 %v123
    %v147 = vunpack.c.l.b16 %v124
    %v148 = vunpack.c.h.b16 %v124
    %v149 = vpack.c.b16 %v137, %v133
    %v150 = vpack.c.b16 %v138, %v134
    %v151 = vpack.c.b16 %v139, %v135
    %v152 = vpack.c.b16 %v140, %v136
    %v153 = vpack.c.b16 %v145, %v141
    %v154 = vpack.c.b16 %v146, %v142
    %v155 = vpack.c.b16 %v147, %v143
    %v156 = vpack.c.b16 %v148, %v144
    %vm165 = vcmask 261120
    %v167 = vsel %vm165, %v116, 0
    %169 = vmatpush.bf16.msra.mxu0 0
    %170 = vmatpush.bf16.msra.mxu0 0
    %171 = vmatpush.bf16.msra.mxu0 0
    %172 = vmatpush.bf16.msra.mxu0 0
    %173 = vmatpush.bf16.msra.mxu0 0
    %174 = vmatpush.bf16.msra.mxu0 0
    %175 = vmatpush.bf16.msra.mxu0 %v153
    %176 = vmatpush.bf16.msra.mxu0 %v149
    %177 = vmatmul.bf16.gmra.mxu0 %v167
    %v178 = vpop.f32.mrf.mxu0
    %v179 = vadd.f32 0.0, %v178
    %v180 = vpop.f32.mrf.mxu0
    %181 = vdwg.mxu0
    %182 = vmatpush.bf16.msra.mxu0 0
    %183 = vmatpush.bf16.msra.mxu0 0
    %184 = vmatpush.bf16.msra.mxu0 0
    %185 = vmatpush.bf16.msra.mxu0 0
    %186 = vmatpush.bf16.msra.mxu0 0
    %187 = vmatpush.bf16.msra.mxu0 0
    %188 = vmatpush.bf16.msra.mxu0 %v154
    %189 = vmatpush.bf16.msra.mxu0 %v150
    %190 = vmatmul.bf16.gmra.mxu0 %v167
    %v191 = vpop.f32.mrf.mxu0
    %v192 = vadd.f32 0.0, %v191
    %v193 = vpop.f32.mrf.mxu0
    %194 = vdwg.mxu0
    %195 = vmatpush.bf16.msra.mxu0 0
    %196 = vmatpush.bf16.msra.mxu0 0
    %197 = vmatpush.bf16.msra.mxu0 0
    %198 = vmatpush.bf16.msra.mxu0 0
    %199 = vmatpush.bf16.msra.mxu0 0
    %200 = vmatpush.bf16.msra.mxu0 0
    %201 = vmatpush.bf16.msra.mxu0 %v155
    %202 = vmatpush.bf16.msra.mxu0 %v151
    %203 = vmatmul.bf16.gmra.mxu0 %v167
    %v204 = vpop.f32.mrf.mxu0
    %v205 = vadd.f32 0.0, %v204
    %v206 = vpop.f32.mrf.mxu0
    %207 = vdwg.mxu0
    %208 = vmatpush.bf16.msra.mxu0 0
    %209 = vmatpush.bf16.msra.mxu0 0
    %210 = vmatpush.bf16.msra.mxu0 0
    %211 = vmatpush.bf16.msra.mxu0 0
    %212 = vmatpush.bf16.msra.mxu0 0
    %213 = vmatpush.bf16.msra.mxu0 0
    %214 = vmatpush.bf16.msra.mxu0 %v156
    %215 = vmatpush.bf16.msra.mxu0 %v152
    %216 = vmatmul.bf16.gmra.mxu0 %v167
    %v217 = vpop.f32.mrf.mxu0
    %v218 = vadd.f32 0.0, %v217
    %v219 = vpop.f32.mrf.mxu0
    %220 = vdwg.mxu0
    %v221 = vld [vmem:[#allocation7] sm:$0xf]
    %v223 = vperm.slane %v221, 0
    %v224 = vperm.slane %v221, 1
    %v225 = vperm.slane %v221, 2
    %v226 = vperm.slane %v221, 3
    %vm231 = vcmp.gt.f32.partialorder %v179, %v223
    %vm232 = vcmp.gt.f32.partialorder %v192, %v224
    %vm233 = vcmp.gt.f32.partialorder %v205, %v225
    %vm234 = vcmp.gt.f32.partialorder %v218, %v226
    %v235 = vsel %vm231, 1, 0
    %v236 = vsel %vm232, 1, 0
    %v237 = vsel %vm233, 1, 0
    %v238 = vsel %vm234, 1, 0
    %v239 = vcvt.s32.f32 %v235
    %v240 = vcvt.s32.f32 %v236
    %v241 = vcvt.s32.f32 %v237
    %v242 = vcvt.s32.f32 %v238
    %v243 = vpack.c.bf16 %v239, %v239
    %v244 = vpack.c.bf16 %v240, %v240
    %v245 = vpack.c.bf16 %v241, %v241
    %v246 = vpack.c.bf16 %v242, %v242
    %v247 = vld [vmem:[#allocation8] sm:$0xff]
    %v248 = vld [vmem:[#allocation8 + $0x8] sm:$0xff]
    %v249 = vld [vmem:[#allocation8 + $0x10] sm:$0xff]
    %v250 = vld [vmem:[#allocation8 + $0x18] sm:$0xff]
    %v251 = vld [vmem:[#allocation8 + $0x20] sm:$0xff]
    %v252 = vld [vmem:[#allocation8 + $0x28] sm:$0xff]
    %v253 = vld [vmem:[#allocation8 + $0x30] sm:$0xff]
    %v254 = vld [vmem:[#allocation8 + $0x38] sm:$0xff]
    %v255 = vld [vmem:[#allocation8 + $0x40] sm:$0xff]
    %v256 = vld [vmem:[#allocation8 + $0x48] sm:$0xff]
    %v257 = vld [vmem:[#allocation8 + $0x50] sm:$0xff]
    %v258 = vld [vmem:[#allocation8 + $0x58] sm:$0xff]
    %v259 = vld [vmem:[#allocation8 + $0x60] sm:$0xff]
    %v260 = vld [vmem:[#allocation8 + $0x68] sm:$0xff]
    %v261 = vld [vmem:[#allocation8 + $0x70] sm:$0xff]
    %v262 = vld [vmem:[#allocation8 + $0x78] sm:$0xff]
    %v263 = vld [vmem:[#allocation8 + $0x80] sm:$0xff]
    %v264 = vld [vmem:[#allocation8 + $0x88] sm:$0xff]
    %v265 = vld [vmem:[#allocation8 + $0x90] sm:$0xff]
    %v266 = vld [vmem:[#allocation8 + $0x98] sm:$0xff]
    %v267 = vld [vmem:[#allocation8 + $0xa0] sm:$0xff]
    %v268 = vld [vmem:[#allocation8 + $0xa8] sm:$0xff]
    %v269 = vld [vmem:[#allocation8 + $0xb0] sm:$0xff]
    %v270 = vld [vmem:[#allocation8 + $0xb8] sm:$0xff]
    %v271 = vld [vmem:[#allocation8 + $0xc0] sm:$0xff]
    %v272 = vld [vmem:[#allocation8 + $0xc8] sm:$0xff]
    %v273 = vld [vmem:[#allocation8 + $0xd0] sm:$0xff]
    %v274 = vld [vmem:[#allocation8 + $0xd8] sm:$0xff]
    %v275 = vld [vmem:[#allocation8 + $0xe0] sm:$0xff]
    %v276 = vld [vmem:[#allocation8 + $0xe8] sm:$0xff]
    %v277 = vld [vmem:[#allocation8 + $0xf0] sm:$0xff]
    %v278 = vld [vmem:[#allocation8 + $0xf8] sm:$0xff]
    %v279 = vld [vmem:[#allocation8 + $0x100] sm:$0xff]
    %v280 = vld [vmem:[#allocation8 + $0x108] sm:$0xff]
    %v281 = vld [vmem:[#allocation8 + $0x110] sm:$0xff]
    %v282 = vld [vmem:[#allocation8 + $0x118] sm:$0xff]
    %v283 = vld [vmem:[#allocation8 + $0x120] sm:$0xff]
    %v284 = vld [vmem:[#allocation8 + $0x128] sm:$0xff]
    %v285 = vld [vmem:[#allocation8 + $0x130] sm:$0xff]
    %v286 = vld [vmem:[#allocation8 + $0x138] sm:$0xff]
    %v287 = vld [vmem:[#allocation8 + $0x140] sm:$0xff]
    %v288 = vld [vmem:[#allocation8 + $0x148] sm:$0xff]
    %v289 = vld [vmem:[#allocation8 + $0x150] sm:$0xff]
    %v290 = vld [vmem:[#allocation8 + $0x158] sm:$0xff]
    %v291 = vld [vmem:[#allocation8 + $0x160] sm:$0xff]
    %v292 = vld [vmem:[#allocation8 + $0x168] sm:$0xff]
    %v293 = vld [vmem:[#allocation8 + $0x170] sm:$0xff]
    %v294 = vld [vmem:[#allocation8 + $0x178] sm:$0xff]
    %v295 = vld [vmem:[#allocation8 + $0x180] sm:$0xff]
    %v296 = vld [vmem:[#allocation8 + $0x188] sm:$0xff]
    %v297 = vld [vmem:[#allocation8 + $0x190] sm:$0xff]
    %v298 = vld [vmem:[#allocation8 + $0x198] sm:$0xff]
    %v299 = vld [vmem:[#allocation8 + $0x1a0] sm:$0xff]
    %v300 = vld [vmem:[#allocation8 + $0x1a8] sm:$0xff]
    %v301 = vld [vmem:[#allocation8 + $0x1b0] sm:$0xff]
    %v302 = vld [vmem:[#allocation8 + $0x1b8] sm:$0xff]
    %v303 = vld [vmem:[#allocation8 + $0x1c0] sm:$0xff]
    %v304 = vld [vmem:[#allocation8 + $0x1c8] sm:$0xff]
    %v305 = vld [vmem:[#allocation8 + $0x1d0] sm:$0xff]
    %v306 = vld [vmem:[#allocation8 + $0x1d8] sm:$0xff]
    %v307 = vld [vmem:[#allocation8 + $0x1e0] sm:$0xff]
    %v308 = vld [vmem:[#allocation8 + $0x1e8] sm:$0xff]
    %v309 = vld [vmem:[#allocation8 + $0x1f0] sm:$0xff]
    %v310 = vld [vmem:[#allocation8 + $0x1f8] sm:$0xff]
    %v311 = vld [vmem:[#allocation8 + $0x200] sm:$0xff]
    %v312 = vld [vmem:[#allocation8 + $0x208] sm:$0xff]
    %v313 = vld [vmem:[#allocation8 + $0x210] sm:$0xff]
    %v314 = vld [vmem:[#allocation8 + $0x218] sm:$0xff]
    %v315 = vld [vmem:[#allocation8 + $0x220] sm:$0xff]
    %v316 = vld [vmem:[#allocation8 + $0x228] sm:$0xff]
    %v317 = vld [vmem:[#allocation8 + $0x230] sm:$0xff]
    %v318 = vld [vmem:[#allocation8 + $0x238] sm:$0xff]
    %v319 = vld [vmem:[#allocation8 + $0x240] sm:$0xff]
    %v320 = vld [vmem:[#allocation8 + $0x248] sm:$0xff]
    %v321 = vld [vmem:[#allocation8 + $0x250] sm:$0xff]
    %v322 = vld [vmem:[#allocation8 + $0x258] sm:$0xff]
    %v323 = vld [vmem:[#allocation8 + $0x260] sm:$0xff]
    %v324 = vld [vmem:[#allocation8 + $0x268] sm:$0xff]
    %v325 = vld [vmem:[#allocation8 + $0x270] sm:$0xff]
    %v326 = vld [vmem:[#allocation8 + $0x278] sm:$0xff]
    %v327 = vld [vmem:[#allocation8 + $0x280] sm:$0xff]
    %v328 = vld [vmem:[#allocation8 + $0x288] sm:$0xff]
    %v329 = vld [vmem:[#allocation8 + $0x290] sm:$0xff]
    %v330 = vld [vmem:[#allocation8 + $0x298] sm:$0xff]
    %v331 = vld [vmem:[#allocation8 + $0x2a0] sm:$0xff]
    %v332 = vld [vmem:[#allocation8 + $0x2a8] sm:$0xff]
    %v333 = vld [vmem:[#allocation8 + $0x2b0] sm:$0xff]
    %v334 = vld [vmem:[#allocation8 + $0x2b8] sm:$0xff]
    %v335 = vld [vmem:[#allocation8 + $0x2c0] sm:$0xff]
    %v336 = vld [vmem:[#allocation8 + $0x2c8] sm:$0xff]
    %v337 = vld [vmem:[#allocation8 + $0x2d0] sm:$0xff]
    %v338 = vld [vmem:[#allocation8 + $0x2d8] sm:$0xff]
    %v339 = vld [vmem:[#allocation8 + $0x2e0] sm:$0xff]
    %v340 = vld [vmem:[#allocation8 + $0x2e8] sm:$0xff]
    %v341 = vld [vmem:[#allocation8 + $0x2f0] sm:$0xff]
    %v342 = vld [vmem:[#allocation8 + $0x2f8] sm:$0xff]
    %v343 = vld [vmem:[#allocation8 + $0x300] sm:$0xff]
    %v344 = vld [vmem:[#allocation8 + $0x308] sm:$0xff]
    %v345 = vld [vmem:[#allocation8 + $0x310] sm:$0xff]
    %v346 = vld [vmem:[#allocation8 + $0x318] sm:$0xff]
    %v347 = vld [vmem:[#allocation8 + $0x320] sm:$0xff]
    %v348 = vld [vmem:[#allocation8 + $0x328] sm:$0xff]
    %v349 = vld [vmem:[#allocation8 + $0x330] sm:$0xff]
    %v350 = vld [vmem:[#allocation8 + $0x338] sm:$0xff]
    %v351 = vld [vmem:[#allocation8 + $0x340] sm:$0xff]
    %v352 = vld [vmem:[#allocation8 + $0x348] sm:$0xff]
    %v353 = vld [vmem:[#allocation8 + $0x350] sm:$0xff]
    %v354 = vld [vmem:[#allocation8 + $0x358] sm:$0xff]
    %v355 = vld [vmem:[#allocation8 + $0x360] sm:$0xff]
    %v356 = vld [vmem:[#allocation8 + $0x368] sm:$0xff]
    %v357 = vld [vmem:[#allocation8 + $0x370] sm:$0xff]
    %v358 = vld [vmem:[#allocation8 + $0x378] sm:$0xff]
    %v359 = vld [vmem:[#allocation8 + $0x380] sm:$0xff]
    %v360 = vld [vmem:[#allocation8 + $0x388] sm:$0xff]
    %v361 = vld [vmem:[#allocation8 + $0x390] sm:$0xff]
    %v362 = vld [vmem:[#allocation8 + $0x398] sm:$0xff]
    %v363 = vld [vmem:[#allocation8 + $0x3a0] sm:$0xff]
    %v364 = vld [vmem:[#allocation8 + $0x3a8] sm:$0xff]
    %v365 = vld [vmem:[#allocation8 + $0x3b0] sm:$0xff]
    %v366 = vld [vmem:[#allocation8 + $0x3b8] sm:$0xff]
    %v367 = vld [vmem:[#allocation8 + $0x3c0] sm:$0xff]
    %v368 = vld [vmem:[#allocation8 + $0x3c8] sm:$0xff]
    %v369 = vld [vmem:[#allocation8 + $0x3d0] sm:$0xff]
    %v370 = vld [vmem:[#allocation8 + $0x3d8] sm:$0xff]
    %v371 = vld [vmem:[#allocation8 + $0x3e0] sm:$0xff]
    %v372 = vld [vmem:[#allocation8 + $0x3e8] sm:$0xff]
    %v373 = vld [vmem:[#allocation8 + $0x3f0] sm:$0xff]
    %v374 = vld [vmem:[#allocation8 + $0x3f8] sm:$0xff]
    %v375 = vld [vmem:[#allocation8 + $0x400] sm:$0xff]
    %v376 = vld [vmem:[#allocation8 + $0x408] sm:$0xff]
    %v377 = vld [vmem:[#allocation8 + $0x410] sm:$0xff]
    %v378 = vld [vmem:[#allocation8 + $0x418] sm:$0xff]
    %v379 = vld [vmem:[#allocation8 + $0x420] sm:$0xff]
    %v380 = vld [vmem:[#allocation8 + $0x428] sm:$0xff]
    %v381 = vld [vmem:[#allocation8 + $0x430] sm:$0xff]
    %v382 = vld [vmem:[#allocation8 + $0x438] sm:$0xff]
    %v383 = vld [vmem:[#allocation8 + $0x440] sm:$0xff]
    %v384 = vld [vmem:[#allocation8 + $0x448] sm:$0xff]
    %v385 = vld [vmem:[#allocation8 + $0x450] sm:$0xff]
    %v386 = vld [vmem:[#allocation8 + $0x458] sm:$0xff]
    %v387 = vld [vmem:[#allocation8 + $0x460] sm:$0xff]
    %v388 = vld [vmem:[#allocation8 + $0x468] sm:$0xff]
    %v389 = vld [vmem:[#allocation8 + $0x470] sm:$0xff]
    %v390 = vld [vmem:[#allocation8 + $0x478] sm:$0xff]
    %v391 = vld [vmem:[#allocation8 + $0x480] sm:$0xff]
    %v392 = vld [vmem:[#allocation8 + $0x488] sm:$0xff]
    %v393 = vld [vmem:[#allocation8 + $0x490] sm:$0xff]
    %v394 = vld [vmem:[#allocation8 + $0x498] sm:$0xff]
    %v395 = vld [vmem:[#allocation8 + $0x4a0] sm:$0xff]
    %v396 = vld [vmem:[#allocation8 + $0x4a8] sm:$0xff]
    %v397 = vld [vmem:[#allocation8 + $0x4b0] sm:$0xff]
    %v398 = vld [vmem:[#allocation8 + $0x4b8] sm:$0xff]
    %v399 = vld [vmem:[#allocation8 + $0x4c0] sm:$0xff]
    %v400 = vld [vmem:[#allocation8 + $0x4c8] sm:$0xff]
    %v401 = vld [vmem:[#allocation8 + $0x4d0] sm:$0xff]
    %v402 = vld [vmem:[#allocation8 + $0x4d8] sm:$0xff]
    %v403 = vld [vmem:[#allocation8 + $0x4e0] sm:$0xff]
    %v404 = vld [vmem:[#allocation8 + $0x4e8] sm:$0xff]
    %v405 = vld [vmem:[#allocation8 + $0x4f0] sm:$0xff]
    %v406 = vld [vmem:[#allocation8 + $0x4f8] sm:$0xff]
    %v407 = vld [vmem:[#allocation8 + $0x500] sm:$0xff]
    %v408 = vld [vmem:[#allocation8 + $0x508] sm:$0xff]
    %v409 = vld [vmem:[#allocation8 + $0x510] sm:$0xff]
    %v410 = vld [vmem:[#allocation8 + $0x518] sm:$0xff]
    %v411 = vld [vmem:[#allocation8 + $0x520] sm:$0xff]
    %v412 = vld [vmem:[#allocation8 + $0x528] sm:$0xff]
    %v413 = vld [vmem:[#allocation8 + $0x530] sm:$0xff]
    %v414 = vld [vmem:[#allocation8 + $0x538] sm:$0xff]
    %v415 = vld [vmem:[#allocation8 + $0x540] sm:$0xff]
    %v416 = vld [vmem:[#allocation8 + $0x548] sm:$0xff]
    %v417 = vld [vmem:[#allocation8 + $0x550] sm:$0xff]
    %v418 = vld [vmem:[#allocation8 + $0x558] sm:$0xff]
    %v419 = vld [vmem:[#allocation8 + $0x560] sm:$0xff]
    %v420 = vld [vmem:[#allocation8 + $0x568] sm:$0xff]
    %v421 = vld [vmem:[#allocation8 + $0x570] sm:$0xff]
    %v422 = vld [vmem:[#allocation8 + $0x578] sm:$0xff]
    %v423 = vld [vmem:[#allocation8 + $0x580] sm:$0xff]
    %v424 = vld [vmem:[#allocation8 + $0x588] sm:$0xff]
    %v425 = vld [vmem:[#allocation8 + $0x590] sm:$0xff]
    %v426 = vld [vmem:[#allocation8 + $0x598] sm:$0xff]
    %v427 = vld [vmem:[#allocation8 + $0x5a0] sm:$0xff]
    %v428 = vld [vmem:[#allocation8 + $0x5a8] sm:$0xff]
    %v429 = vld [vmem:[#allocation8 + $0x5b0] sm:$0xff]
    %v430 = vld [vmem:[#allocation8 + $0x5b8] sm:$0xff]
    %v431 = vld [vmem:[#allocation8 + $0x5c0] sm:$0xff]
    %v432 = vld [vmem:[#allocation8 + $0x5c8] sm:$0xff]
    %v433 = vld [vmem:[#allocation8 + $0x5d0] sm:$0xff]
    %v434 = vld [vmem:[#allocation8 + $0x5d8] sm:$0xff]
    %v435 = vld [vmem:[#allocation8 + $0x5e0] sm:$0xff]
    %v436 = vld [vmem:[#allocation8 + $0x5e8] sm:$0xff]
    %v437 = vld [vmem:[#allocation8 + $0x5f0] sm:$0xff]
    %v438 = vld [vmem:[#allocation8 + $0x5f8] sm:$0xff]
    %v631 = vunpack.c.l.b16 %v247
    %v632 = vunpack.c.h.b16 %v247
    %v633 = vunpack.c.l.b16 %v248
    %v634 = vunpack.c.h.b16 %v248
    %v635 = vunpack.c.l.b16 %v249
    %v636 = vunpack.c.h.b16 %v249
    %v637 = vunpack.c.l.b16 %v250
    %v638 = vunpack.c.h.b16 %v250
    %v639 = vunpack.c.l.b16 %v251
    %v640 = vunpack.c.h.b16 %v251
    %v641 = vunpack.c.l.b16 %v252
    %v642 = vunpack.c.h.b16 %v252
    %v643 = vunpack.c.l.b16 %v253
    %v644 = vunpack.c.h.b16 %v253
    %v645 = vunpack.c.l.b16 %v254
    %v646 = vunpack.c.h.b16 %v254
    %v647 = vunpack.c.l.b16 %v255
    %v648 = vunpack.c.h.b16 %v255
    %v649 = vunpack.c.l.b16 %v256
    %v650 = vunpack.c.h.b16 %v256
    %v651 = vunpack.c.l.b16 %v257
    %v652 = vunpack.c.h.b16 %v257
    %v653 = vunpack.c.l.b16 %v258
    %v654 = vunpack.c.h.b16 %v258
    %v655 = vunpack.c.l.b16 %v259
    %v656 = vunpack.c.h.b16 %v259
    %v657 = vunpack.c.l.b16 %v260
    %v658 = vunpack.c.h.b16 %v260
    %v659 = vunpack.c.l.b16 %v261
    %v660 = vunpack.c.h.b16 %v261
    %v661 = vunpack.c.l.b16 %v262
    %v662 = vunpack.c.h.b16 %v262
    %v663 = vunpack.c.l.b16 %v263
    %v664 = vunpack.c.h.b16 %v263
    %v665 = vunpack.c.l.b16 %v264
    %v666 = vunpack.c.h.b16 %v264
    %v667 = vunpack.c.l.b16 %v265
    %v668 = vunpack.c.h.b16 %v265
    %v669 = vunpack.c.l.b16 %v266
    %v670 = vunpack.c.h.b16 %v266
    %v671 = vunpack.c.l.b16 %v267
    %v672 = vunpack.c.h.b16 %v267
    %v673 = vunpack.c.l.b16 %v268
    %v674 = vunpack.c.h.b16 %v268
    %v675 = vunpack.c.l.b16 %v269
    %v676 = vunpack.c.h.b16 %v269
    %v677 = vunpack.c.l.b16 %v270
    %v678 = vunpack.c.h.b16 %v270
    %v679 = vunpack.c.l.b16 %v271
    %v680 = vunpack.c.h.b16 %v271
    %v681 = vunpack.c.l.b16 %v272
    %v682 = vunpack.c.h.b16 %v272
    %v683 = vunpack.c.l.b16 %v273
    %v684 = vunpack.c.h.b16 %v273
    %v685 = vunpack.c.l.b16 %v274
    %v686 = vunpack.c.h.b16 %v274
    %v687 = vunpack.c.l.b16 %v275
    %v688 = vunpack.c.h.b16 %v275
    %v689 = vunpack.c.l.b16 %v276
    %v690 = vunpack.c.h.b16 %v276
    %v691 = vunpack.c.l.b16 %v277
    %v692 = vunpack.c.h.b16 %v277
    %v693 = vunpack.c.l.b16 %v278
    %v694 = vunpack.c.h.b16 %v278
    %v695 = vunpack.c.l.b16 %v279
    %v696 = vunpack.c.h.b16 %v279
    %v697 = vunpack.c.l.b16 %v280
    %v698 = vunpack.c.h.b16 %v280
    %v699 = vunpack.c.l.b16 %v281
    %v700 = vunpack.c.h.b16 %v281
    %v701 = vunpack.c.l.b16 %v282
    %v702 = vunpack.c.h.b16 %v282
    %v703 = vunpack.c.l.b16 %v283
    %v704 = vunpack.c.h.b16 %v283
    %v705 = vunpack.c.l.b16 %v284
    %v706 = vunpack.c.h.b16 %v284
    %v707 = vunpack.c.l.b16 %v285
    %v708 = vunpack.c.h.b16 %v285
    %v709 = vunpack.c.l.b16 %v286
    %v710 = vunpack.c.h.b16 %v286
    %v711 = vunpack.c.l.b16 %v287
    %v712 = vunpack.c.h.b16 %v287
    %v713 = vunpack.c.l.b16 %v288
    %v714 = vunpack.c.h.b16 %v288
    %v715 = vunpack.c.l.b16 %v289
    %v716 = vunpack.c.h.b16 %v289
    %v717 = vunpack.c.l.b16 %v290
    %v718 = vunpack.c.h.b16 %v290
    %v719 = vunpack.c.l.b16 %v291
    %v720 = vunpack.c.h.b16 %v291
    %v721 = vunpack.c.l.b16 %v292
    %v722 = vunpack.c.h.b16 %v292
    %v723 = vunpack.c.l.b16 %v293
    %v724 = vunpack.c.h.b16 %v293
    %v725 = vunpack.c.l.b16 %v294
    %v726 = vunpack.c.h.b16 %v294
    %v727 = vunpack.c.l.b16 %v295
    %v728 = vunpack.c.h.b16 %v295
    %v729 = vunpack.c.l.b16 %v296
    %v730 = vunpack.c.h.b16 %v296
    %v731 = vunpack.c.l.b16 %v297
    %v732 = vunpack.c.h.b16 %v297
    %v733 = vunpack.c.l.b16 %v298
    %v734 = vunpack.c.h.b16 %v298
    %v735 = vunpack.c.l.b16 %v299
    %v736 = vunpack.c.h.b16 %v299
    %v737 = vunpack.c.l.b16 %v300
    %v738 = vunpack.c.h.b16 %v300
    %v739 = vunpack.c.l.b16 %v301
    %v740 = vunpack.c.h.b16 %v301
    %v741 = vunpack.c.l.b16 %v302
    %v742 = vunpack.c.h.b16 %v302
    %v743 = vunpack.c.l.b16 %v303
    %v744 = vunpack.c.h.b16 %v303
    %v745 = vunpack.c.l.b16 %v304
    %v746 = vunpack.c.h.b16 %v304
    %v747 = vunpack.c.l.b16 %v305
    %v748 = vunpack.c.h.b16 %v305
    %v749 = vunpack.c.l.b16 %v306
    %v750 = vunpack.c.h.b16 %v306
    %v751 = vunpack.c.l.b16 %v307
    %v752 = vunpack.c.h.b16 %v307
    %v753 = vunpack.c.l.b16 %v308
    %v754 = vunpack.c.h.b16 %v308
    %v755 = vunpack.c.l.b16 %v309
    %v756 = vunpack.c.h.b16 %v309
    %v757 = vunpack.c.l.b16 %v310
    %v758 = vunpack.c.h.b16 %v310
    %v759 = vunpack.c.l.b16 %v311
    %v760 = vunpack.c.h.b16 %v311
    %v761 = vunpack.c.l.b16 %v312
    %v762 = vunpack.c.h.b16 %v312
    %v763 = vunpack.c.l.b16 %v313
    %v764 = vunpack.c.h.b16 %v313
    %v765 = vunpack.c.l.b16 %v314
    %v766 = vunpack.c.h.b16 %v314
    %v767 = vunpack.c.l.b16 %v315
    %v768 = vunpack.c.h.b16 %v315
    %v769 = vunpack.c.l.b16 %v316
    %v770 = vunpack.c.h.b16 %v316
    %v771 = vunpack.c.l.b16 %v317
    %v772 = vunpack.c.h.b16 %v317
    %v773 = vunpack.c.l.b16 %v318
    %v774 = vunpack.c.h.b16 %v318
    %v775 = vunpack.c.l.b16 %v319
    %v776 = vunpack.c.h.b16 %v319
    %v777 = vunpack.c.l.b16 %v320
    %v778 = vunpack.c.h.b16 %v320
    %v779 = vunpack.c.l.b16 %v321
    %v780 = vunpack.c.h.b16 %v321
    %v781 = vunpack.c.l.b16 %v322
    %v782 = vunpack.c.h.b16 %v322
    %v783 = vunpack.c.l.b16 %v323
    %v784 = vunpack.c.h.b16 %v323
    %v785 = vunpack.c.l.b16 %v324
    %v786 = vunpack.c.h.b16 %v324
    %v787 = vunpack.c.l.b16 %v325
    %v788 = vunpack.c.h.b16 %v325
    %v789 = vunpack.c.l.b16 %v326
    %v790 = vunpack.c.h.b16 %v326
    %v791 = vunpack.c.l.b16 %v327
    %v792 = vunpack.c.h.b16 %v327
    %v793 = vunpack.c.l.b16 %v328
    %v794 = vunpack.c.h.b16 %v328
    %v795 = vunpack.c.l.b16 %v329
    %v796 = vunpack.c.h.b16 %v329
    %v797 = vunpack.c.l.b16 %v330
    %v798 = vunpack.c.h.b16 %v330
    %v799 = vunpack.c.l.b16 %v331
    %v800 = vunpack.c.h.b16 %v331
    %v801 = vunpack.c.l.b16 %v332
    %v802 = vunpack.c.h.b16 %v332
    %v803 = vunpack.c.l.b16 %v333
    %v804 = vunpack.c.h.b16 %v333
    %v805 = vunpack.c.l.b16 %v334
    %v806 = vunpack.c.h.b16 %v334
    %v807 = vunpack.c.l.b16 %v335
    %v808 = vunpack.c.h.b16 %v335
    %v809 = vunpack.c.l.b16 %v336
    %v810 = vunpack.c.h.b16 %v336
    %v811 = vunpack.c.l.b16 %v337
    %v812 = vunpack.c.h.b16 %v337
    %v813 = vunpack.c.l.b16 %v338
    %v814 = vunpack.c.h.b16 %v338
    %v815 = vunpack.c.l.b16 %v339
    %v816 = vunpack.c.h.b16 %v339
    %v817 = vunpack.c.l.b16 %v340
    %v818 = vunpack.c.h.b16 %v340
    %v819 = vunpack.c.l.b16 %v341
    %v820 = vunpack.c.h.b16 %v341
    %v821 = vunpack.c.l.b16 %v342
    %v822 = vunpack.c.h.b16 %v342
    %v823 = vunpack.c.l.b16 %v343
    %v824 = vunpack.c.h.b16 %v343
    %v825 = vunpack.c.l.b16 %v344
    %v826 = vunpack.c.h.b16 %v344
    %v827 = vunpack.c.l.b16 %v345
    %v828 = vunpack.c.h.b16 %v345
    %v829 = vunpack.c.l.b16 %v346
    %v830 = vunpack.c.h.b16 %v346
    %v831 = vunpack.c.l.b16 %v347
    %v832 = vunpack.c.h.b16 %v347
    %v833 = vunpack.c.l.b16 %v348
    %v834 = vunpack.c.h.b16 %v348
    %v835 = vunpack.c.l.b16 %v349
    %v836 = vunpack.c.h.b16 %v349
    %v837 = vunpack.c.l.b16 %v350
    %v838 = vunpack.c.h.b16 %v350
    %v839 = vunpack.c.l.b16 %v351
    %v840 = vunpack.c.h.b16 %v351
    %v841 = vunpack.c.l.b16 %v352
    %v842 = vunpack.c.h.b16 %v352
    %v843 = vunpack.c.l.b16 %v353
    %v844 = vunpack.c.h.b16 %v353
    %v845 = vunpack.c.l.b16 %v354
    %v846 = vunpack.c.h.b16 %v354
    %v847 = vunpack.c.l.b16 %v355
    %v848 = vunpack.c.h.b16 %v355
    %v849 = vunpack.c.l.b16 %v356
    %v850 = vunpack.c.h.b16 %v356
    %v851 = vunpack.c.l.b16 %v357
    %v852 = vunpack.c.h.b16 %v357
    %v853 = vunpack.c.l.b16 %v358
    %v854 = vunpack.c.h.b16 %v358
    %v855 = vunpack.c.l.b16 %v359
    %v856 = vunpack.c.h.b16 %v359
    %v857 = vunpack.c.l.b16 %v360
    %v858 = vunpack.c.h.b16 %v360
    %v859 = vunpack.c.l.b16 %v361
    %v860 = vunpack.c.h.b16 %v361
    %v861 = vunpack.c.l.b16 %v362
    %v862 = vunpack.c.h.b16 %v362
    %v863 = vunpack.c.l.b16 %v363
    %v864 = vunpack.c.h.b16 %v363
    %v865 = vunpack.c.l.b16 %v364
    %v866 = vunpack.c.h.b16 %v364
    %v867 = vunpack.c.l.b16 %v365
    %v868 = vunpack.c.h.b16 %v365
    %v869 = vunpack.c.l.b16 %v366
    %v870 = vunpack.c.h.b16 %v366
    %v871 = vunpack.c.l.b16 %v367
    %v872 = vunpack.c.h.b16 %v367
    %v873 = vunpack.c.l.b16 %v368
    %v874 = vunpack.c.h.b16 %v368
    %v875 = vunpack.c.l.b16 %v369
    %v876 = vunpack.c.h.b16 %v369
    %v877 = vunpack.c.l.b16 %v370
    %v878 = vunpack.c.h.b16 %v370
    %v879 = vunpack.c.l.b16 %v371
    %v880 = vunpack.c.h.b16 %v371
    %v881 = vunpack.c.l.b16 %v372
    %v882 = vunpack.c.h.b16 %v372
    %v883 = vunpack.c.l.b16 %v373
    %v884 = vunpack.c.h.b16 %v373
    %v885 = vunpack.c.l.b16 %v374
    %v886 = vunpack.c.h.b16 %v374
    %v887 = vunpack.c.l.b16 %v375
    %v888 = vunpack.c.h.b16 %v375
    %v889 = vunpack.c.l.b16 %v376
    %v890 = vunpack.c.h.b16 %v376
    %v891 = vunpack.c.l.b16 %v377
    %v892 = vunpack.c.h.b16 %v377
    %v893 = vunpack.c.l.b16 %v378
    %v894 = vunpack.c.h.b16 %v378
    %v895 = vunpack.c.l.b16 %v379
    %v896 = vunpack.c.h.b16 %v379
    %v897 = vunpack.c.l.b16 %v380
    %v898 = vunpack.c.h.b16 %v380
    %v899 = vunpack.c.l.b16 %v381
    %v900 = vunpack.c.h.b16 %v381
    %v901 = vunpack.c.l.b16 %v382
    %v902 = vunpack.c.h.b16 %v382
    %v903 = vunpack.c.l.b16 %v383
    %v904 = vunpack.c.h.b16 %v383
    %v905 = vunpack.c.l.b16 %v384
    %v906 = vunpack.c.h.b16 %v384
    %v907 = vunpack.c.l.b16 %v385
    %v908 = vunpack.c.h.b16 %v385
    %v909 = vunpack.c.l.b16 %v386
    %v910 = vunpack.c.h.b16 %v386
    %v911 = vunpack.c.l.b16 %v387
    %v912 = vunpack.c.h.b16 %v387
    %v913 = vunpack.c.l.b16 %v388
    %v914 = vunpack.c.h.b16 %v388
    %v915 = vunpack.c.l.b16 %v389
    %v916 = vunpack.c.h.b16 %v389
    %v917 = vunpack.c.l.b16 %v390
    %v918 = vunpack.c.h.b16 %v390
    %v919 = vunpack.c.l.b16 %v391
    %v920 = vunpack.c.h.b16 %v391
    %v921 = vunpack.c.l.b16 %v392
    %v922 = vunpack.c.h.b16 %v392
    %v923 = vunpack.c.l.b16 %v393
    %v924 = vunpack.c.h.b16 %v393
    %v925 = vunpack.c.l.b16 %v394
    %v926 = vunpack.c.h.b16 %v394
    %v927 = vunpack.c.l.b16 %v395
    %v928 = vunpack.c.h.b16 %v395
    %v929 = vunpack.c.l.b16 %v396
    %v930 = vunpack.c.h.b16 %v396
    %v931 = vunpack.c.l.b16 %v397
    %v932 = vunpack.c.h.b16 %v397
    %v933 = vunpack.c.l.b16 %v398
    %v934 = vunpack.c.h.b16 %v398
    %v935 = vunpack.c.l.b16 %v399
    %v936 = vunpack.c.h.b16 %v399
    %v937 = vunpack.c.l.b16 %v400
    %v938 = vunpack.c.h.b16 %v400
    %v939 = vunpack.c.l.b16 %v401
    %v940 = vunpack.c.h.b16 %v401
    %v941 = vunpack.c.l.b16 %v402
    %v942 = vunpack.c.h.b16 %v402
    %v943 = vunpack.c.l.b16 %v403
    %v944 = vunpack.c.h.b16 %v403
    %v945 = vunpack.c.l.b16 %v404
    %v946 = vunpack.c.h.b16 %v404
    %v947 = vunpack.c.l.b16 %v405
    %v948 = vunpack.c.h.b16 %v405
    %v949 = vunpack.c.l.b16 %v406
    %v950 = vunpack.c.h.b16 %v406
    %v951 = vunpack.c.l.b16 %v407
    %v952 = vunpack.c.h.b16 %v407
    %v953 = vunpack.c.l.b16 %v408
    %v954 = vunpack.c.h.b16 %v408
    %v955 = vunpack.c.l.b16 %v409
    %v956 = vunpack.c.h.b16 %v409
    %v957 = vunpack.c.l.b16 %v410
    %v958 = vunpack.c.h.b16 %v410
    %v959 = vunpack.c.l.b16 %v411
    %v960 = vunpack.c.h.b16 %v411
    %v961 = vunpack.c.l.b16 %v412
    %v962 = vunpack.c.h.b16 %v412
    %v963 = vunpack.c.l.b16 %v413
    %v964 = vunpack.c.h.b16 %v413
    %v965 = vunpack.c.l.b16 %v414
    %v966 = vunpack.c.h.b16 %v414
    %v967 = vunpack.c.l.b16 %v415
    %v968 = vunpack.c.h.b16 %v415
    %v969 = vunpack.c.l.b16 %v416
    %v970 = vunpack.c.h.b16 %v416
    %v971 = vunpack.c.l.b16 %v417
    %v972 = vunpack.c.h.b16 %v417
    %v973 = vunpack.c.l.b16 %v418
    %v974 = vunpack.c.h.b16 %v418
    %v975 = vunpack.c.l.b16 %v419
    %v976 = vunpack.c.h.b16 %v419
    %v977 = vunpack.c.l.b16 %v420
    %v978 = vunpack.c.h.b16 %v420
    %v979 = vunpack.c.l.b16 %v421
    %v980 = vunpack.c.h.b16 %v421
    %v981 = vunpack.c.l.b16 %v422
    %v982 = vunpack.c.h.b16 %v422
    %v983 = vunpack.c.l.b16 %v423
    %v984 = vunpack.c.h.b16 %v423
    %v985 = vunpack.c.l.b16 %v424
    %v986 = vunpack.c.h.b16 %v424
    %v987 = vunpack.c.l.b16 %v425
    %v988 = vunpack.c.h.b16 %v425
    %v989 = vunpack.c.l.b16 %v426
    %v990 = vunpack.c.h.b16 %v426
    %v991 = vunpack.c.l.b16 %v427
    %v992 = vunpack.c.h.b16 %v427
    %v993 = vunpack.c.l.b16 %v428
    %v994 = vunpack.c.h.b16 %v428
    %v995 = vunpack.c.l.b16 %v429
    %v996 = vunpack.c.h.b16 %v429
    %v997 = vunpack.c.l.b16 %v430
    %v998 = vunpack.c.h.b16 %v430
    %v999 = vunpack.c.l.b16 %v431
    %v1000 = vunpack.c.h.b16 %v431
    %v1001 = vunpack.c.l.b16 %v432
    %v1002 = vunpack.c.h.b16 %v432
    %v1003 = vunpack.c.l.b16 %v433
    %v1004 = vunpack.c.h.b16 %v433
    %v1005 = vunpack.c.l.b16 %v434
    %v1006 = vunpack.c.h.b16 %v434
    %v1007 = vunpack.c.l.b16 %v435
    %v1008 = vunpack.c.h.b16 %v435
    %v1009 = vunpack.c.l.b16 %v436
    %v1010 = vunpack.c.h.b16 %v436
    %v1011 = vunpack.c.l.b16 %v437
    %v1012 = vunpack.c.h.b16 %v437
    %v1013 = vunpack.c.l.b16 %v438
    %v1014 = vunpack.c.h.b16 %v438
    %v1015 = vpack.c.b16 %v637, %v631
    %v1016 = vpack.c.b16 %v638, %v632
    %v1017 = vpack.c.b16 %v639, %v633
    %v1018 = vpack.c.b16 %v640, %v634
    %v1019 = vpack.c.b16 %v641, %v635
    %v1020 = vpack.c.b16 %v642, %v636
    %v1021 = vpack.c.b16 %v649, %v643
    %v1022 = vpack.c.b16 %v650, %v644
    %v1023 = vpack.c.b16 %v651, %v645
    %v1024 = vpack.c.b16 %v652, %v646
    %v1025 = vpack.c.b16 %v653, %v647
    %v1026 = vpack.c.b16 %v654, %v648
    %v1027 = vpack.c.b16 %v661, %v655
    %v1028 = vpack.c.b16 %v662, %v656
    %v1029 = vpack.c.b16 %v663, %v657
    %v1030 = vpack.c.b16 %v664, %v658
    %v1031 = vpack.c.b16 %v665, %v659
    %v1032 = vpack.c.b16 %v666, %v660
    %v1033 = vpack.c.b16 %v673, %v667
    %v1034 = vpack.c.b16 %v674, %v668
    %v1035 = vpack.c.b16 %v675, %v669
    %v1036 = vpack.c.b16 %v676, %v670
    %v1037 = vpack.c.b16 %v677, %v671
    %v1038 = vpack.c.b16 %v678, %v672
    %v1039 = vpack.c.b16 %v685, %v679
    %v1040 = vpack.c.b16 %v686, %v680
    %v1041 = vpack.c.b16 %v687, %v681
    %v1042 = vpack.c.b16 %v688, %v682
    %v1043 = vpack.c.b16 %v689, %v683
    %v1044 = vpack.c.b16 %v690, %v684
    %v1045 = vpack.c.b16 %v697, %v691
    %v1046 = vpack.c.b16 %v698, %v692
    %v1047 = vpack.c.b16 %v699, %v693
    %v1048 = vpack.c.b16 %v700, %v694
    %v1049 = vpack.c.b16 %v701, %v695
    %v1050 = vpack.c.b16 %v702, %v696
    %v1051 = vpack.c.b16 %v709, %v703
    %v1052 = vpack.c.b16 %v710, %v704
    %v1053 = vpack.c.b16 %v711, %v705
    %v1054 = vpack.c.b16 %v712, %v706
    %v1055 = vpack.c.b16 %v713, %v707
    %v1056 = vpack.c.b16 %v714, %v708
    %v1057 = vpack.c.b16 %v721, %v715
    %v1058 = vpack.c.b16 %v722, %v716
    %v1059 = vpack.c.b16 %v723, %v717
    %v1060 = vpack.c.b16 %v724, %v718
    %v1061 = vpack.c.b16 %v725, %v719
    %v1062 = vpack.c.b16 %v726, %v720
    %v1063 = vpack.c.b16 %v733, %v727
    %v1064 = vpack.c.b16 %v734, %v728
    %v1065 = vpack.c.b16 %v735, %v729
    %v1066 = vpack.c.b16 %v736, %v730
    %v1067 = vpack.c.b16 %v737, %v731
    %v1068 = vpack.c.b16 %v738, %v732
    %v1069 = vpack.c.b16 %v745, %v739
    %v1070 = vpack.c.b16 %v746, %v740
    %v1071 = vpack.c.b16 %v747, %v741
    %v1072 = vpack.c.b16 %v748, %v742
    %v1073 = vpack.c.b16 %v749, %v743
    %v1074 = vpack.c.b16 %v750, %v744
    %v1075 = vpack.c.b16 %v757, %v751
    %v1076 = vpack.c.b16 %v758, %v752
    %v1077 = vpack.c.b16 %v759, %v753
    %v1078 = vpack.c.b16 %v760, %v754
    %v1079 = vpack.c.b16 %v761, %v755
    %v1080 = vpack.c.b16 %v762, %v756
    %v1081 = vpack.c.b16 %v769, %v763
    %v1082 = vpack.c.b16 %v770, %v764
    %v1083 = vpack.c.b16 %v771, %v765
    %v1084 = vpack.c.b16 %v772, %v766
    %v1085 = vpack.c.b16 %v773, %v767
    %v1086 = vpack.c.b16 %v774, %v768
    %v1087 = vpack.c.b16 %v781, %v775
    %v1088 = vpack.c.b16 %v782, %v776
    %v1089 = vpack.c.b16 %v783, %v777
    %v1090 = vpack.c.b16 %v784, %v778
    %v1091 = vpack.c.b16 %v785, %v779
    %v1092 = vpack.c.b16 %v786, %v780
    %v1093 = vpack.c.b16 %v793, %v787
    %v1094 = vpack.c.b16 %v794, %v788
    %v1095 = vpack.c.b16 %v795, %v789
    %v1096 = vpack.c.b16 %v796, %v790
    %v1097 = vpack.c.b16 %v797, %v791
    %v1098 = vpack.c.b16 %v798, %v792
    %v1099 = vpack.c.b16 %v805, %v799
    %v1100 = vpack.c.b16 %v806, %v800
    %v1101 = vpack.c.b16 %v807, %v801
    %v1102 = vpack.c.b16 %v808, %v802
    %v1103 = vpack.c.b16 %v809, %v803
    %v1104 = vpack.c.b16 %v810, %v804
    %v1105 = vpack.c.b16 %v817, %v811
    %v1106 = vpack.c.b16 %v818, %v812
    %v1107 = vpack.c.b16 %v819, %v813
    %v1108 = vpack.c.b16 %v820, %v814
    %v1109 = vpack.c.b16 %v821, %v815
    %v1110 = vpack.c.b16 %v822, %v816
    %v1111 = vpack.c.b16 %v829, %v823
    %v1112 = vpack.c.b16 %v830, %v824
    %v1113 = vpack.c.b16 %v831, %v825
    %v1114 = vpack.c.b16 %v832, %v826
    %v1115 = vpack.c.b16 %v833, %v827
    %v1116 = vpack.c.b16 %v834, %v828
    %v1117 = vpack.c.b16 %v841, %v835
    %v1118 = vpack.c.b16 %v842, %v836
    %v1119 = vpack.c.b16 %v843, %v837
    %v1120 = vpack.c.b16 %v844, %v838
    %v1121 = vpack.c.b16 %v845, %v839
    %v1122 = vpack.c.b16 %v846, %v840
    %v1123 = vpack.c.b16 %v853, %v847
    %v1124 = vpack.c.b16 %v854, %v848
    %v1125 = vpack.c.b16 %v855, %v849
    %v1126 = vpack.c.b16 %v856, %v850
    %v1127 = vpack.c.b16 %v857, %v851
    %v1128 = vpack.c.b16 %v858, %v852
    %v1129 = vpack.c.b16 %v865, %v859
    %v1130 = vpack.c.b16 %v866, %v860
    %v1131 = vpack.c.b16 %v867, %v861
    %v1132 = vpack.c.b16 %v868, %v862
    %v1133 = vpack.c.b16 %v869, %v863
    %v1134 = vpack.c.b16 %v870, %v864
    %v1135 = vpack.c.b16 %v877, %v871
    %v1136 = vpack.c.b16 %v878, %v872
    %v1137 = vpack.c.b16 %v879, %v873
    %v1138 = vpack.c.b16 %v880, %v874
    %v1139 = vpack.c.b16 %v881, %v875
    %v1140 = vpack.c.b16 %v882, %v876
    %v1141 = vpack.c.b16 %v889, %v883
    %v1142 = vpack.c.b16 %v890, %v884
    %v1143 = vpack.c.b16 %v891, %v885
    %v1144 = vpack.c.b16 %v892, %v886
    %v1145 = vpack.c.b16 %v893, %v887
    %v1146 = vpack.c.b16 %v894, %v888
    %v1147 = vpack.c.b16 %v901, %v895
    %v1148 = vpack.c.b16 %v902, %v896
    %v1149 = vpack.c.b16 %v903, %v897
    %v1150 = vpack.c.b16 %v904, %v898
    %v1151 = vpack.c.b16 %v905, %v899
    %v1152 = vpack.c.b16 %v906, %v900
    %v1153 = vpack.c.b16 %v913, %v907
    %v1154 = vpack.c.b16 %v914, %v908
    %v1155 = vpack.c.b16 %v915, %v909
    %v1156 = vpack.c.b16 %v916, %v910
    %v1157 = vpack.c.b16 %v917, %v911
    %v1158 = vpack.c.b16 %v918, %v912
    %v1159 = vpack.c.b16 %v925, %v919
    %v1160 = vpack.c.b16 %v926, %v920
    %v1161 = vpack.c.b16 %v927, %v921
    %v1162 = vpack.c.b16 %v928, %v922
    %v1163 = vpack.c.b16 %v929, %v923
    %v1164 = vpack.c.b16 %v930, %v924
    %v1165 = vpack.c.b16 %v937, %v931
    %v1166 = vpack.c.b16 %v938, %v932
    %v1167 = vpack.c.b16 %v939, %v933
    %v1168 = vpack.c.b16 %v940, %v934
    %v1169 = vpack.c.b16 %v941, %v935
    %v1170 = vpack.c.b16 %v942, %v936
    %v1171 = vpack.c.b16 %v949, %v943
    %v1172 = vpack.c.b16 %v950, %v944
    %v1173 = vpack.c.b16 %v951, %v945
    %v1174 = vpack.c.b16 %v952, %v946
    %v1175 = vpack.c.b16 %v953, %v947
    %v1176 = vpack.c.b16 %v954, %v948
    %v1177 = vpack.c.b16 %v961, %v955
    %v1178 = vpack.c.b16 %v962, %v956
    %v1179 = vpack.c.b16 %v963, %v957
    %v1180 = vpack.c.b16 %v964, %v958
    %v1181 = vpack.c.b16 %v965, %v959
    %v1182 = vpack.c.b16 %v966, %v960
    %v1183 = vpack.c.b16 %v973, %v967
    %v1184 = vpack.c.b16 %v974, %v968
    %v1185 = vpack.c.b16 %v975, %v969
    %v1186 = vpack.c.b16 %v976, %v970
    %v1187 = vpack.c.b16 %v977, %v971
    %v1188 = vpack.c.b16 %v978, %v972
    %v1189 = vpack.c.b16 %v985, %v979
    %v1190 = vpack.c.b16 %v986, %v980
    %v1191 = vpack.c.b16 %v987, %v981
    %v1192 = vpack.c.b16 %v988, %v982
    %v1193 = vpack.c.b16 %v989, %v983
    %v1194 = vpack.c.b16 %v990, %v984
    %v1195 = vpack.c.b16 %v997, %v991
    %v1196 = vpack.c.b16 %v998, %v992
    %v1197 = vpack.c.b16 %v999, %v993
    %v1198 = vpack.c.b16 %v1000, %v994
    %v1199 = vpack.c.b16 %v1001, %v995
    %v1200 = vpack.c.b16 %v1002, %v996
    %v1201 = vpack.c.b16 %v1009, %v1003
    %v1202 = vpack.c.b16 %v1010, %v1004
    %v1203 = vpack.c.b16 %v1011, %v1005
    %v1204 = vpack.c.b16 %v1012, %v1006
    %v1205 = vpack.c.b16 %v1013, %v1007
    %v1206 = vpack.c.b16 %v1014, %v1008
    %1399 = vmatpush.bf16.msra.mxu0 %v1057
    %1400 = vmatpush.bf16.msra.mxu0 %v1051
    %1401 = vmatpush.bf16.msra.mxu0 %v1045
    %1402 = vmatpush.bf16.msra.mxu0 %v1039
    %1403 = vmatpush.bf16.msra.mxu0 %v1033
    %1404 = vmatpush.bf16.msra.mxu0 %v1027
    %1405 = vmatpush.bf16.msra.mxu0 %v1021
    %1406 = vmatpush.bf16.msra.mxu0 %v1015
    %1407 = vmatmul.bf16.gmra.mxu0 %v243
    %v1408 = vpop.f32.mrf.mxu0
    %v1409 = vadd.f32 0.0, %v1408
    %v1410 = vpop.f32.mrf.mxu0
    %1411 = vdwg.mxu0
    %1412 = vmatpush.bf16.msra.mxu0 %v1105
    %1413 = vmatpush.bf16.msra.mxu0 %v1099
    %1414 = vmatpush.bf16.msra.mxu0 %v1093
    %1415 = vmatpush.bf16.msra.mxu0 %v1087
    %1416 = vmatpush.bf16.msra.mxu0 %v1081
    %1417 = vmatpush.bf16.msra.mxu0 %v1075
    %1418 = vmatpush.bf16.msra.mxu0 %v1069
    %1419 = vmatpush.bf16.msra.mxu0 %v1063
    %1420 = vmatmul.bf16.gmra.mxu0 %v244
    %v1421 = vpop.f32.mrf.mxu0
    %v1422 = vadd.f32 %v1409, %v1421
    %v1423 = vpop.f32.mrf.mxu0
    %1424 = vdwg.mxu0
    %1425 = vmatpush.bf16.msra.mxu0 %v1153
    %1426 = vmatpush.bf16.msra.mxu0 %v1147
    %1427 = vmatpush.bf16.msra.mxu0 %v1141
    %1428 = vmatpush.bf16.msra.mxu0 %v1135
    %1429 = vmatpush.bf16.msra.mxu0 %v1129
    %1430 = vmatpush.bf16.msra.mxu0 %v1123
    %1431 = vmatpush.bf16.msra.mxu0 %v1117
    %1432 = vmatpush.bf16.msra.mxu0 %v1111
    %1433 = vmatmul.bf16.gmra.mxu0 %v245
    %v1434 = vpop.f32.mrf.mxu0
    %v1435 = vadd.f32 %v1422, %v1434
    %v1436 = vpop.f32.mrf.mxu0
    %1437 = vdwg.mxu0
    %1438 = vmatpush.bf16.msra.mxu0 %v1201
    %1439 = vmatpush.bf16.msra.mxu0 %v1195
    %1440 = vmatpush.bf16.msra.mxu0 %v1189
    %1441 = vmatpush.bf16.msra.mxu0 %v1183
    %1442 = vmatpush.bf16.msra.mxu0 %v1177
    %1443 = vmatpush.bf16.msra.mxu0 %v1171
    %1444 = vmatpush.bf16.msra.mxu0 %v1165
    %1445 = vmatpush.bf16.msra.mxu0 %v1159
    %1446 = vmatmul.bf16.gmra.mxu0 %v246
    %v1447 = vpop.f32.mrf.mxu0
    %v1448 = vadd.f32 %v1435, %v1447
    %v1449 = vpop.f32.mrf.mxu0
    %1450 = vdwg.mxu0
    %1451 = vmatpush.bf16.msra.mxu0 %v1058
    %1452 = vmatpush.bf16.msra.mxu0 %v1052
    %1453 = vmatpush.bf16.msra.mxu0 %v1046
    %1454 = vmatpush.bf16.msra.mxu0 %v1040
    %1455 = vmatpush.bf16.msra.mxu0 %v1034
    %1456 = vmatpush.bf16.msra.mxu0 %v1028
    %1457 = vmatpush.bf16.msra.mxu0 %v1022
    %1458 = vmatpush.bf16.msra.mxu0 %v1016
    %1459 = vmatmul.bf16.gmra.mxu0 %v243
    %v1460 = vpop.f32.mrf.mxu0
    %v1461 = vadd.f32 0.0, %v1460
    %v1462 = vpop.f32.mrf.mxu0
    %1463 = vdwg.mxu0
    %1464 = vmatpush.bf16.msra.mxu0 %v1106
    %1465 = vmatpush.bf16.msra.mxu0 %v1100
    %1466 = vmatpush.bf16.msra.mxu0 %v1094
    %1467 = vmatpush.bf16.msra.mxu0 %v1088
    %1468 = vmatpush.bf16.msra.mxu0 %v1082
    %1469 = vmatpush.bf16.msra.mxu0 %v1076
    %1470 = vmatpush.bf16.msra.mxu0 %v1070
    %1471 = vmatpush.bf16.msra.mxu0 %v1064
    %1472 = vmatmul.bf16.gmra.mxu0 %v244
    %v1473 = vpop.f32.mrf.mxu0
    %v1474 = vadd.f32 %v1461, %v1473
    %v1475 = vpop.f32.mrf.mxu0
    %1476 = vdwg.mxu0
    %1477 = vmatpush.bf16.msra.mxu0 %v1154
    %1478 = vmatpush.bf16.msra.mxu0 %v1148
    %1479 = vmatpush.bf16.msra.mxu0 %v1142
    %1480 = vmatpush.bf16.msra.mxu0 %v1136
    %1481 = vmatpush.bf16.msra.mxu0 %v1130
    %1482 = vmatpush.bf16.msra.mxu0 %v1124
    %1483 = vmatpush.bf16.msra.mxu0 %v1118
    %1484 = vmatpush.bf16.msra.mxu0 %v1112
    %1485 = vmatmul.bf16.gmra.mxu0 %v245
    %v1486 = vpop.f32.mrf.mxu0
    %v1487 = vadd.f32 %v1474, %v1486
    %v1488 = vpop.f32.mrf.mxu0
    %1489 = vdwg.mxu0
    %1490 = vmatpush.bf16.msra.mxu0 %v1202
    %1491 = vmatpush.bf16.msra.mxu0 %v1196
    %1492 = vmatpush.bf16.msra.mxu0 %v1190
    %1493 = vmatpush.bf16.msra.mxu0 %v1184
    %1494 = vmatpush.bf16.msra.mxu0 %v1178
    %1495 = vmatpush.bf16.msra.mxu0 %v1172
    %1496 = vmatpush.bf16.msra.mxu0 %v1166
    %1497 = vmatpush.bf16.msra.mxu0 %v1160
    %1498 = vmatmul.bf16.gmra.mxu0 %v246
    %v1499 = vpop.f32.mrf.mxu0
    %v1500 = vadd.f32 %v1487, %v1499
    %v1501 = vpop.f32.mrf.mxu0
    %1502 = vdwg.mxu0
    %1503 = vmatpush.bf16.msra.mxu0 %v1059
    %1504 = vmatpush.bf16.msra.mxu0 %v1053
    %1505 = vmatpush.bf16.msra.mxu0 %v1047
    %1506 = vmatpush.bf16.msra.mxu0 %v1041
    %1507 = vmatpush.bf16.msra.mxu0 %v1035
    %1508 = vmatpush.bf16.msra.mxu0 %v1029
    %1509 = vmatpush.bf16.msra.mxu0 %v1023
    %1510 = vmatpush.bf16.msra.mxu0 %v1017
    %1511 = vmatmul.bf16.gmra.mxu0 %v243
    %v1512 = vpop.f32.mrf.mxu0
    %v1513 = vadd.f32 0.0, %v1512
    %v1514 = vpop.f32.mrf.mxu0
    %1515 = vdwg.mxu0
    %1516 = vmatpush.bf16.msra.mxu0 %v1107
    %1517 = vmatpush.bf16.msra.mxu0 %v1101
    %1518 = vmatpush.bf16.msra.mxu0 %v1095
    %1519 = vmatpush.bf16.msra.mxu0 %v1089
    %1520 = vmatpush.bf16.msra.mxu0 %v1083
    %1521 = vmatpush.bf16.msra.mxu0 %v1077
    %1522 = vmatpush.bf16.msra.mxu0 %v1071
    %1523 = vmatpush.bf16.msra.mxu0 %v1065
    %1524 = vmatmul.bf16.gmra.mxu0 %v244
    %v1525 = vpop.f32.mrf.mxu0
    %v1526 = vadd.f32 %v1513, %v1525
    %v1527 = vpop.f32.mrf.mxu0
    %1528 = vdwg.mxu0
    %1529 = vmatpush.bf16.msra.mxu0 %v1155
    %1530 = vmatpush.bf16.msra.mxu0 %v1149
    %1531 = vmatpush.bf16.msra.mxu0 %v1143
    %1532 = vmatpush.bf16.msra.mxu0 %v1137
    %1533 = vmatpush.bf16.msra.mxu0 %v1131
    %1534 = vmatpush.bf16.msra.mxu0 %v1125
    %1535 = vmatpush.bf16.msra.mxu0 %v1119
    %1536 = vmatpush.bf16.msra.mxu0 %v1113
    %1537 = vmatmul.bf16.gmra.mxu0 %v245
    %v1538 = vpop.f32.mrf.mxu0
    %v1539 = vadd.f32 %v1526, %v1538
    %v1540 = vpop.f32.mrf.mxu0
    %1541 = vdwg.mxu0
    %1542 = vmatpush.bf16.msra.mxu0 %v1203
    %1543 = vmatpush.bf16.msra.mxu0 %v1197
    %1544 = vmatpush.bf16.msra.mxu0 %v1191
    %1545 = vmatpush.bf16.msra.mxu0 %v1185
    %1546 = vmatpush.bf16.msra.mxu0 %v1179
    %1547 = vmatpush.bf16.msra.mxu0 %v1173
    %1548 = vmatpush.bf16.msra.mxu0 %v1167
    %1549 = vmatpush.bf16.msra.mxu0 %v1161
    %1550 = vmatmul.bf16.gmra.mxu0 %v246
    %v1551 = vpop.f32.mrf.mxu0
    %v1552 = vadd.f32 %v1539, %v1551
    %v1553 = vpop.f32.mrf.mxu0
    %1554 = vdwg.mxu0
    %1555 = vmatpush.bf16.msra.mxu0 %v1060
    %1556 = vmatpush.bf16.msra.mxu0 %v1054
    %1557 = vmatpush.bf16.msra.mxu0 %v1048
    %1558 = vmatpush.bf16.msra.mxu0 %v1042
    %1559 = vmatpush.bf16.msra.mxu0 %v1036
    %1560 = vmatpush.bf16.msra.mxu0 %v1030
    %1561 = vmatpush.bf16.msra.mxu0 %v1024
    %1562 = vmatpush.bf16.msra.mxu0 %v1018
    %1563 = vmatmul.bf16.gmra.mxu0 %v243
    %v1564 = vpop.f32.mrf.mxu0
    %v1565 = vadd.f32 0.0, %v1564
    %v1566 = vpop.f32.mrf.mxu0
    %1567 = vdwg.mxu0
    %1568 = vmatpush.bf16.msra.mxu0 %v1108
    %1569 = vmatpush.bf16.msra.mxu0 %v1102
    %1570 = vmatpush.bf16.msra.mxu0 %v1096
    %1571 = vmatpush.bf16.msra.mxu0 %v1090
    %1572 = vmatpush.bf16.msra.mxu0 %v1084
    %1573 = vmatpush.bf16.msra.mxu0 %v1078
    %1574 = vmatpush.bf16.msra.mxu0 %v1072
    %1575 = vmatpush.bf16.msra.mxu0 %v1066
    %1576 = vmatmul.bf16.gmra.mxu0 %v244
    %v1577 = vpop.f32.mrf.mxu0
    %v1578 = vadd.f32 %v1565, %v1577
    %v1579 = vpop.f32.mrf.mxu0
    %1580 = vdwg.mxu0
    %1581 = vmatpush.bf16.msra.mxu0 %v1156
    %1582 = vmatpush.bf16.msra.mxu0 %v1150
    %1583 = vmatpush.bf16.msra.mxu0 %v1144
    %1584 = vmatpush.bf16.msra.mxu0 %v1138
    %1585 = vmatpush.bf16.msra.mxu0 %v1132
    %1586 = vmatpush.bf16.msra.mxu0 %v1126
    %1587 = vmatpush.bf16.msra.mxu0 %v1120
    %1588 = vmatpush.bf16.msra.mxu0 %v1114
    %1589 = vmatmul.bf16.gmra.mxu0 %v245
    %v1590 = vpop.f32.mrf.mxu0
    %v1591 = vadd.f32 %v1578, %v1590
    %v1592 = vpop.f32.mrf.mxu0
    %1593 = vdwg.mxu0
    %1594 = vmatpush.bf16.msra.mxu0 %v1204
    %1595 = vmatpush.bf16.msra.mxu0 %v1198
    %1596 = vmatpush.bf16.msra.mxu0 %v1192
    %1597 = vmatpush.bf16.msra.mxu0 %v1186
    %1598 = vmatpush.bf16.msra.mxu0 %v1180
    %1599 = vmatpush.bf16.msra.mxu0 %v1174
    %1600 = vmatpush.bf16.msra.mxu0 %v1168
    %1601 = vmatpush.bf16.msra.mxu0 %v1162
    %1602 = vmatmul.bf16.gmra.mxu0 %v246
    %v1603 = vpop.f32.mrf.mxu0
    %v1604 = vadd.f32 %v1591, %v1603
    %v1605 = vpop.f32.mrf.mxu0
    %1606 = vdwg.mxu0
    %1607 = vmatpush.bf16.msra.mxu0 %v1061
    %1608 = vmatpush.bf16.msra.mxu0 %v1055
    %1609 = vmatpush.bf16.msra.mxu0 %v1049
    %1610 = vmatpush.bf16.msra.mxu0 %v1043
    %1611 = vmatpush.bf16.msra.mxu0 %v1037
    %1612 = vmatpush.bf16.msra.mxu0 %v1031
    %1613 = vmatpush.bf16.msra.mxu0 %v1025
    %1614 = vmatpush.bf16.msra.mxu0 %v1019
    %1615 = vmatmul.bf16.gmra.mxu0 %v243
    %v1616 = vpop.f32.mrf.mxu0
    %v1617 = vadd.f32 0.0, %v1616
    %v1618 = vpop.f32.mrf.mxu0
    %1619 = vdwg.mxu0
    %1620 = vmatpush.bf16.msra.mxu0 %v1109
    %1621 = vmatpush.bf16.msra.mxu0 %v1103
    %1622 = vmatpush.bf16.msra.mxu0 %v1097
    %1623 = vmatpush.bf16.msra.mxu0 %v1091
    %1624 = vmatpush.bf16.msra.mxu0 %v1085
    %1625 = vmatpush.bf16.msra.mxu0 %v1079
    %1626 = vmatpush.bf16.msra.mxu0 %v1073
    %1627 = vmatpush.bf16.msra.mxu0 %v1067
    %1628 = vmatmul.bf16.gmra.mxu0 %v244
    %v1629 = vpop.f32.mrf.mxu0
    %v1630 = vadd.f32 %v1617, %v1629
    %v1631 = vpop.f32.mrf.mxu0
    %1632 = vdwg.mxu0
    %1633 = vmatpush.bf16.msra.mxu0 %v1157
    %1634 = vmatpush.bf16.msra.mxu0 %v1151
    %1635 = vmatpush.bf16.msra.mxu0 %v1145
    %1636 = vmatpush.bf16.msra.mxu0 %v1139
    %1637 = vmatpush.bf16.msra.mxu0 %v1133
    %1638 = vmatpush.bf16.msra.mxu0 %v1127
    %1639 = vmatpush.bf16.msra.mxu0 %v1121
    %1640 = vmatpush.bf16.msra.mxu0 %v1115
    %1641 = vmatmul.bf16.gmra.mxu0 %v245
    %v1642 = vpop.f32.mrf.mxu0
    %v1643 = vadd.f32 %v1630, %v1642
    %v1644 = vpop.f32.mrf.mxu0
    %1645 = vdwg.mxu0
    %1646 = vmatpush.bf16.msra.mxu0 %v1205
    %1647 = vmatpush.bf16.msra.mxu0 %v1199
    %1648 = vmatpush.bf16.msra.mxu0 %v1193
    %1649 = vmatpush.bf16.msra.mxu0 %v1187
    %1650 = vmatpush.bf16.msra.mxu0 %v1181
    %1651 = vmatpush.bf16.msra.mxu0 %v1175
    %1652 = vmatpush.bf16.msra.mxu0 %v1169
    %1653 = vmatpush.bf16.msra.mxu0 %v1163
    %1654 = vmatmul.bf16.gmra.mxu0 %v246
    %v1655 = vpop.f32.mrf.mxu0
    %v1656 = vadd.f32 %v1643, %v1655
    %v1657 = vpop.f32.mrf.mxu0
    %1658 = vdwg.mxu0
    %1659 = vmatpush.bf16.msra.mxu0 %v1062
    %1660 = vmatpush.bf16.msra.mxu0 %v1056
    %1661 = vmatpush.bf16.msra.mxu0 %v1050
    %1662 = vmatpush.bf16.msra.mxu0 %v1044
    %1663 = vmatpush.bf16.msra.mxu0 %v1038
    %1664 = vmatpush.bf16.msra.mxu0 %v1032
    %1665 = vmatpush.bf16.msra.mxu0 %v1026
    %1666 = vmatpush.bf16.msra.mxu0 %v1020
    %1667 = vmatmul.bf16.gmra.mxu0 %v243
    %v1668 = vpop.f32.mrf.mxu0
    %v1669 = vadd.f32 0.0, %v1668
    %v1670 = vpop.f32.mrf.mxu0
    %1671 = vdwg.mxu0
    %1672 = vmatpush.bf16.msra.mxu0 %v1110
    %1673 = vmatpush.bf16.msra.mxu0 %v1104
    %1674 = vmatpush.bf16.msra.mxu0 %v1098
    %1675 = vmatpush.bf16.msra.mxu0 %v1092
    %1676 = vmatpush.bf16.msra.mxu0 %v1086
    %1677 = vmatpush.bf16.msra.mxu0 %v1080
    %1678 = vmatpush.bf16.msra.mxu0 %v1074
    %1679 = vmatpush.bf16.msra.mxu0 %v1068
    %1680 = vmatmul.bf16.gmra.mxu0 %v244
    %v1681 = vpop.f32.mrf.mxu0
    %v1682 = vadd.f32 %v1669, %v1681
    %v1683 = vpop.f32.mrf.mxu0
    %1684 = vdwg.mxu0
    %1685 = vmatpush.bf16.msra.mxu0 %v1158
    %1686 = vmatpush.bf16.msra.mxu0 %v1152
    %1687 = vmatpush.bf16.msra.mxu0 %v1146
    %1688 = vmatpush.bf16.msra.mxu0 %v1140
    %1689 = vmatpush.bf16.msra.mxu0 %v1134
    %1690 = vmatpush.bf16.msra.mxu0 %v1128
    %1691 = vmatpush.bf16.msra.mxu0 %v1122
    %1692 = vmatpush.bf16.msra.mxu0 %v1116
    %1693 = vmatmul.bf16.gmra.mxu0 %v245
    %v1694 = vpop.f32.mrf.mxu0
    %v1695 = vadd.f32 %v1682, %v1694
    %v1696 = vpop.f32.mrf.mxu0
    %1697 = vdwg.mxu0
    %1698 = vmatpush.bf16.msra.mxu0 %v1206
    %1699 = vmatpush.bf16.msra.mxu0 %v1200
    %1700 = vmatpush.bf16.msra.mxu0 %v1194
    %1701 = vmatpush.bf16.msra.mxu0 %v1188
    %1702 = vmatpush.bf16.msra.mxu0 %v1182
    %1703 = vmatpush.bf16.msra.mxu0 %v1176
    %1704 = vmatpush.bf16.msra.mxu0 %v1170
    %1705 = vmatpush.bf16.msra.mxu0 %v1164
    %1706 = vmatmul.bf16.gmra.mxu0 %v246
    %v1707 = vpop.f32.mrf.mxu0
    %v1708 = vadd.f32 %v1695, %v1707
    %v1709 = vpop.f32.mrf.mxu0
    %1710 = vdwg.mxu0
    %v1711 = vld [vmem:[#allocation10] sm:$0x3f]
    %v1713 = vperm.slane %v1711, 0
    %v1714 = vperm.slane %v1711, 1
    %v1715 = vperm.slane %v1711, 2
    %v1716 = vperm.slane %v1711, 3
    %v1717 = vperm.slane %v1711, 4
    %v1718 = vperm.slane %v1711, 5
    %vm1725 = vcmp.gt.f32.partialorder %v1448, %v1713
    %vm1726 = vcmp.gt.f32.partialorder %v1500, %v1714
    %vm1727 = vcmp.gt.f32.partialorder %v1552, %v1715
    %vm1728 = vcmp.gt.f32.partialorder %v1604, %v1716
    %vm1729 = vcmp.gt.f32.partialorder %v1656, %v1717
    %vm1730 = vcmp.gt.f32.partialorder %v1708, %v1718
    %v1731 = vsel %vm1725, 1, 0
    %v1732 = vsel %vm1726, 1, 0
    %v1733 = vsel %vm1727, 1, 0
    %v1734 = vsel %vm1728, 1, 0
    %v1735 = vsel %vm1729, 1, 0
    %v1736 = vsel %vm1730, 1, 0
    %v1737 = vcvt.s32.f32 %v1731
    %v1738 = vcvt.s32.f32 %v1732
    %v1739 = vcvt.s32.f32 %v1733
    %v1740 = vcvt.s32.f32 %v1734
    %v1741 = vcvt.s32.f32 %v1735
    %v1742 = vcvt.s32.f32 %v1736
    %v1743 = vpack.c.bf16 %v1737, %v1737
    %v1744 = vpack.c.bf16 %v1738, %v1738
    %v1745 = vpack.c.bf16 %v1739, %v1739
    %v1746 = vpack.c.bf16 %v1740, %v1740
    %v1747 = vpack.c.bf16 %v1741, %v1741
    %v1748 = vpack.c.bf16 %v1742, %v1742
    %v1749 = vld [vmem:[#allocation11] sm:$0xf]
    %v1750 = vld [vmem:[#allocation11 + $0x4] sm:$0xf]
    %v1751 = vld [vmem:[#allocation11 + $0x8] sm:$0xf]
    %v1752 = vld [vmem:[#allocation11 + $0xc] sm:$0xf]
    %v1753 = vld [vmem:[#allocation11 + $0x10] sm:$0xf]
    %v1754 = vld [vmem:[#allocation11 + $0x14] sm:$0xf]
    %v1755 = vld [vmem:[#allocation11 + $0x18] sm:$0xf]
    %v1756 = vld [vmem:[#allocation11 + $0x1c] sm:$0xf]
    %v1757 = vld [vmem:[#allocation11 + $0x20] sm:$0xf]
    %v1758 = vld [vmem:[#allocation11 + $0x24] sm:$0xf]
    %v1759 = vld [vmem:[#allocation11 + $0x28] sm:$0xf]
    %v1760 = vld [vmem:[#allocation11 + $0x2c] sm:$0xf]
    %v1761 = vld [vmem:[#allocation11 + $0x30] sm:$0xf]
    %v1762 = vld [vmem:[#allocation11 + $0x34] sm:$0xf]
    %v1763 = vld [vmem:[#allocation11 + $0x38] sm:$0xf]
    %v1764 = vld [vmem:[#allocation11 + $0x3c] sm:$0xf]
    %v1765 = vld [vmem:[#allocation11 + $0x40] sm:$0xf]
    %v1766 = vld [vmem:[#allocation11 + $0x44] sm:$0xf]
    %v1767 = vld [vmem:[#allocation11 + $0x48] sm:$0xf]
    %v1768 = vld [vmem:[#allocation11 + $0x4c] sm:$0xf]
    %v1769 = vld [vmem:[#allocation11 + $0x50] sm:$0xf]
    %v1770 = vld [vmem:[#allocation11 + $0x54] sm:$0xf]
    %v1771 = vld [vmem:[#allocation11 + $0x58] sm:$0xf]
    %v1772 = vld [vmem:[#allocation11 + $0x5c] sm:$0xf]
    %v1773 = vld [vmem:[#allocation11 + $0x60] sm:$0xf]
    %v1774 = vld [vmem:[#allocation11 + $0x64] sm:$0xf]
    %v1775 = vld [vmem:[#allocation11 + $0x68] sm:$0xf]
    %v1776 = vld [vmem:[#allocation11 + $0x6c] sm:$0xf]
    %v1777 = vld [vmem:[#allocation11 + $0x70] sm:$0xf]
    %v1778 = vld [vmem:[#allocation11 + $0x74] sm:$0xf]
    %v1779 = vld [vmem:[#allocation11 + $0x78] sm:$0xf]
    %v1780 = vld [vmem:[#allocation11 + $0x7c] sm:$0xf]
    %v1781 = vld [vmem:[#allocation11 + $0x80] sm:$0xf]
    %v1782 = vld [vmem:[#allocation11 + $0x84] sm:$0xf]
    %v1783 = vld [vmem:[#allocation11 + $0x88] sm:$0xf]
    %v1784 = vld [vmem:[#allocation11 + $0x8c] sm:$0xf]
    %v1785 = vld [vmem:[#allocation11 + $0x90] sm:$0xf]
    %v1786 = vld [vmem:[#allocation11 + $0x94] sm:$0xf]
    %v1787 = vld [vmem:[#allocation11 + $0x98] sm:$0xf]
    %v1788 = vld [vmem:[#allocation11 + $0x9c] sm:$0xf]
    %v1789 = vld [vmem:[#allocation11 + $0xa0] sm:$0xf]
    %v1790 = vld [vmem:[#allocation11 + $0xa4] sm:$0xf]
    %v1791 = vld [vmem:[#allocation11 + $0xa8] sm:$0xf]
    %v1792 = vld [vmem:[#allocation11 + $0xac] sm:$0xf]
    %v1793 = vld [vmem:[#allocation11 + $0xb0] sm:$0xf]
    %v1794 = vld [vmem:[#allocation11 + $0xb4] sm:$0xf]
    %v1795 = vld [vmem:[#allocation11 + $0xb8] sm:$0xf]
    %v1796 = vld [vmem:[#allocation11 + $0xbc] sm:$0xf]
    %v1797 = vld [vmem:[#allocation11 + $0xc0] sm:$0xf]
    %v1798 = vld [vmem:[#allocation11 + $0xc4] sm:$0xf]
    %v1799 = vld [vmem:[#allocation11 + $0xc8] sm:$0xf]
    %v1800 = vld [vmem:[#allocation11 + $0xcc] sm:$0xf]
    %v1801 = vld [vmem:[#allocation11 + $0xd0] sm:$0xf]
    %v1802 = vld [vmem:[#allocation11 + $0xd4] sm:$0xf]
    %v1803 = vld [vmem:[#allocation11 + $0xd8] sm:$0xf]
    %v1804 = vld [vmem:[#allocation11 + $0xdc] sm:$0xf]
    %v1805 = vld [vmem:[#allocation11 + $0xe0] sm:$0xf]
    %v1806 = vld [vmem:[#allocation11 + $0xe4] sm:$0xf]
    %v1807 = vld [vmem:[#allocation11 + $0xe8] sm:$0xf]
    %v1808 = vld [vmem:[#allocation11 + $0xec] sm:$0xf]
    %v1809 = vld [vmem:[#allocation11 + $0xf0] sm:$0xf]
    %v1810 = vld [vmem:[#allocation11 + $0xf4] sm:$0xf]
    %v1811 = vld [vmem:[#allocation11 + $0xf8] sm:$0xf]
    %v1812 = vld [vmem:[#allocation11 + $0xfc] sm:$0xf]
    %v1813 = vld [vmem:[#allocation11 + $0x100] sm:$0xf]
    %v1814 = vld [vmem:[#allocation11 + $0x104] sm:$0xf]
    %v1815 = vld [vmem:[#allocation11 + $0x108] sm:$0xf]
    %v1816 = vld [vmem:[#allocation11 + $0x10c] sm:$0xf]
    %v1817 = vld [vmem:[#allocation11 + $0x110] sm:$0xf]
    %v1818 = vld [vmem:[#allocation11 + $0x114] sm:$0xf]
    %v1819 = vld [vmem:[#allocation11 + $0x118] sm:$0xf]
    %v1820 = vld [vmem:[#allocation11 + $0x11c] sm:$0xf]
    %v1821 = vld [vmem:[#allocation11 + $0x120] sm:$0xf]
    %v1822 = vld [vmem:[#allocation11 + $0x124] sm:$0xf]
    %v1823 = vld [vmem:[#allocation11 + $0x128] sm:$0xf]
    %v1824 = vld [vmem:[#allocation11 + $0x12c] sm:$0xf]
    %v1825 = vld [vmem:[#allocation11 + $0x130] sm:$0xf]
    %v1826 = vld [vmem:[#allocation11 + $0x134] sm:$0xf]
    %v1827 = vld [vmem:[#allocation11 + $0x138] sm:$0xf]
    %v1828 = vld [vmem:[#allocation11 + $0x13c] sm:$0xf]
    %v1829 = vld [vmem:[#allocation11 + $0x140] sm:$0xf]
    %v1830 = vld [vmem:[#allocation11 + $0x144] sm:$0xf]
    %v1831 = vld [vmem:[#allocation11 + $0x148] sm:$0xf]
    %v1832 = vld [vmem:[#allocation11 + $0x14c] sm:$0xf]
    %v1833 = vld [vmem:[#allocation11 + $0x150] sm:$0xf]
    %v1834 = vld [vmem:[#allocation11 + $0x154] sm:$0xf]
    %v1835 = vld [vmem:[#allocation11 + $0x158] sm:$0xf]
    %v1836 = vld [vmem:[#allocation11 + $0x15c] sm:$0xf]
    %v1837 = vld [vmem:[#allocation11 + $0x160] sm:$0xf]
    %v1838 = vld [vmem:[#allocation11 + $0x164] sm:$0xf]
    %v1839 = vld [vmem:[#allocation11 + $0x168] sm:$0xf]
    %v1840 = vld [vmem:[#allocation11 + $0x16c] sm:$0xf]
    %v1841 = vld [vmem:[#allocation11 + $0x170] sm:$0xf]
    %v1842 = vld [vmem:[#allocation11 + $0x174] sm:$0xf]
    %v1843 = vld [vmem:[#allocation11 + $0x178] sm:$0xf]
    %v1844 = vld [vmem:[#allocation11 + $0x17c] sm:$0xf]
    %v1845 = vld [vmem:[%s6] sm:$0x1]
    %v1847 = vperm.slane %v1845, 0
    %v1945 = vunpack.c.l.b16 %v1749
    %v1946 = vunpack.c.l.b16 %v1750
    %v1947 = vunpack.c.l.b16 %v1751
    %v1948 = vunpack.c.l.b16 %v1752
    %v1949 = vunpack.c.l.b16 %v1753
    %v1950 = vunpack.c.l.b16 %v1754
    %v1951 = vunpack.c.l.b16 %v1755
    %v1952 = vunpack.c.l.b16 %v1756
    %v1953 = vunpack.c.l.b16 %v1757
    %v1954 = vunpack.c.l.b16 %v1758
    %v1955 = vunpack.c.l.b16 %v1759
    %v1956 = vunpack.c.l.b16 %v1760
    %v1957 = vunpack.c.l.b16 %v1761
    %v1958 = vunpack.c.l.b16 %v1762
    %v1959 = vunpack.c.l.b16 %v1763
    %v1960 = vunpack.c.l.b16 %v1764
    %v1961 = vunpack.c.l.b16 %v1765
    %v1962 = vunpack.c.l.b16 %v1766
    %v1963 = vunpack.c.l.b16 %v1767
    %v1964 = vunpack.c.l.b16 %v1768
    %v1965 = vunpack.c.l.b16 %v1769
    %v1966 = vunpack.c.l.b16 %v1770
    %v1967 = vunpack.c.l.b16 %v1771
    %v1968 = vunpack.c.l.b16 %v1772
    %v1969 = vunpack.c.l.b16 %v1773
    %v1970 = vunpack.c.l.b16 %v1774
    %v1971 = vunpack.c.l.b16 %v1775
    %v1972 = vunpack.c.l.b16 %v1776
    %v1973 = vunpack.c.l.b16 %v1777
    %v1974 = vunpack.c.l.b16 %v1778
    %v1975 = vunpack.c.l.b16 %v1779
    %v1976 = vunpack.c.l.b16 %v1780
    %v1977 = vunpack.c.l.b16 %v1781
    %v1978 = vunpack.c.l.b16 %v1782
    %v1979 = vunpack.c.l.b16 %v1783
    %v1980 = vunpack.c.l.b16 %v1784
    %v1981 = vunpack.c.l.b16 %v1785
    %v1982 = vunpack.c.l.b16 %v1786
    %v1983 = vunpack.c.l.b16 %v1787
    %v1984 = vunpack.c.l.b16 %v1788
    %v1985 = vunpack.c.l.b16 %v1789
    %v1986 = vunpack.c.l.b16 %v1790
    %v1987 = vunpack.c.l.b16 %v1791
    %v1988 = vunpack.c.l.b16 %v1792
    %v1989 = vunpack.c.l.b16 %v1793
    %v1990 = vunpack.c.l.b16 %v1794
    %v1991 = vunpack.c.l.b16 %v1795
    %v1992 = vunpack.c.l.b16 %v1796
    %v1993 = vunpack.c.l.b16 %v1797
    %v1994 = vunpack.c.l.b16 %v1798
    %v1995 = vunpack.c.l.b16 %v1799
    %v1996 = vunpack.c.l.b16 %v1800
    %v1997 = vunpack.c.l.b16 %v1801
    %v1998 = vunpack.c.l.b16 %v1802
    %v1999 = vunpack.c.l.b16 %v1803
    %v2000 = vunpack.c.l.b16 %v1804
    %v2001 = vunpack.c.l.b16 %v1805
    %v2002 = vunpack.c.l.b16 %v1806
    %v2003 = vunpack.c.l.b16 %v1807
    %v2004 = vunpack.c.l.b16 %v1808
    %v2005 = vunpack.c.l.b16 %v1809
    %v2006 = vunpack.c.l.b16 %v1810
    %v2007 = vunpack.c.l.b16 %v1811
    %v2008 = vunpack.c.l.b16 %v1812
    %v2009 = vunpack.c.l.b16 %v1813
    %v2010 = vunpack.c.l.b16 %v1814
    %v2011 = vunpack.c.l.b16 %v1815
    %v2012 = vunpack.c.l.b16 %v1816
    %v2013 = vunpack.c.l.b16 %v1817
    %v2014 = vunpack.c.l.b16 %v1818
    %v2015 = vunpack.c.l.b16 %v1819
    %v2016 = vunpack.c.l.b16 %v1820
    %v2017 = vunpack.c.l.b16 %v1821
    %v2018 = vunpack.c.l.b16 %v1822
    %v2019 = vunpack.c.l.b16 %v1823
    %v2020 = vunpack.c.l.b16 %v1824
    %v2021 = vunpack.c.l.b16 %v1825
    %v2022 = vunpack.c.l.b16 %v1826
    %v2023 = vunpack.c.l.b16 %v1827
    %v2024 = vunpack.c.l.b16 %v1828
    %v2025 = vunpack.c.l.b16 %v1829
    %v2026 = vunpack.c.l.b16 %v1830
    %v2027 = vunpack.c.l.b16 %v1831
    %v2028 = vunpack.c.l.b16 %v1832
    %v2029 = vunpack.c.l.b16 %v1833
    %v2030 = vunpack.c.l.b16 %v1834
    %v2031 = vunpack.c.l.b16 %v1835
    %v2032 = vunpack.c.l.b16 %v1836
    %v2033 = vunpack.c.l.b16 %v1837
    %v2034 = vunpack.c.l.b16 %v1838
    %v2035 = vunpack.c.l.b16 %v1839
    %v2036 = vunpack.c.l.b16 %v1840
    %v2037 = vunpack.c.l.b16 %v1841
    %v2038 = vunpack.c.l.b16 %v1842
    %v2039 = vunpack.c.l.b16 %v1843
    %v2040 = vunpack.c.l.b16 %v1844
    %v2041 = vpack.c.b16 %v1946, %v1945
    %v2042 = vpack.c.b16 %v1948, %v1947
    %v2043 = vpack.c.b16 %v1950, %v1949
    %v2044 = vpack.c.b16 %v1952, %v1951
    %v2045 = vpack.c.b16 %v1954, %v1953
    %v2046 = vpack.c.b16 %v1956, %v1955
    %v2047 = vpack.c.b16 %v1958, %v1957
    %v2048 = vpack.c.b16 %v1960, %v1959
    %v2049 = vpack.c.b16 %v1962, %v1961
    %v2050 = vpack.c.b16 %v1964, %v1963
    %v2051 = vpack.c.b16 %v1966, %v1965
    %v2052 = vpack.c.b16 %v1968, %v1967
    %v2053 = vpack.c.b16 %v1970, %v1969
    %v2054 = vpack.c.b16 %v1972, %v1971
    %v2055 = vpack.c.b16 %v1974, %v1973
    %v2056 = vpack.c.b16 %v1976, %v1975
    %v2057 = vpack.c.b16 %v1978, %v1977
    %v2058 = vpack.c.b16 %v1980, %v1979
    %v2059 = vpack.c.b16 %v1982, %v1981
    %v2060 = vpack.c.b16 %v1984, %v1983
    %v2061 = vpack.c.b16 %v1986, %v1985
    %v2062 = vpack.c.b16 %v1988, %v1987
    %v2063 = vpack.c.b16 %v1990, %v1989
    %v2064 = vpack.c.b16 %v1992, %v1991
    %v2065 = vpack.c.b16 %v1994, %v1993
    %v2066 = vpack.c.b16 %v1996, %v1995
    %v2067 = vpack.c.b16 %v1998, %v1997
    %v2068 = vpack.c.b16 %v2000, %v1999
    %v2069 = vpack.c.b16 %v2002, %v2001
    %v2070 = vpack.c.b16 %v2004, %v2003
    %v2071 = vpack.c.b16 %v2006, %v2005
    %v2072 = vpack.c.b16 %v2008, %v2007
    %v2073 = vpack.c.b16 %v2010, %v2009
    %v2074 = vpack.c.b16 %v2012, %v2011
    %v2075 = vpack.c.b16 %v2014, %v2013
    %v2076 = vpack.c.b16 %v2016, %v2015
    %v2077 = vpack.c.b16 %v2018, %v2017
    %v2078 = vpack.c.b16 %v2020, %v2019
    %v2079 = vpack.c.b16 %v2022, %v2021
    %v2080 = vpack.c.b16 %v2024, %v2023
    %v2081 = vpack.c.b16 %v2026, %v2025
    %v2082 = vpack.c.b16 %v2028, %v2027
    %v2083 = vpack.c.b16 %v2030, %v2029
    %v2084 = vpack.c.b16 %v2032, %v2031
    %v2085 = vpack.c.b16 %v2034, %v2033
    %v2086 = vpack.c.b16 %v2036, %v2035
    %v2087 = vpack.c.b16 %v2038, %v2037
    %v2088 = vpack.c.b16 %v2040, %v2039
    %2137 = vmatpush.bf16.msra.mxu0 %v2048
    %2138 = vmatpush.bf16.msra.mxu0 %v2047
    %2139 = vmatpush.bf16.msra.mxu0 %v2046
    %2140 = vmatpush.bf16.msra.mxu0 %v2045
    %2141 = vmatpush.bf16.msra.mxu0 %v2044
    %2142 = vmatpush.bf16.msra.mxu0 %v2043
    %2143 = vmatpush.bf16.msra.mxu0 %v2042
    %2144 = vmatpush.bf16.msra.mxu0 %v2041
    %2145 = vmatmul.bf16.gmra.mxu0 %v1743
    %v2146 = vpop.f32.mrf.mxu0
    %v2147 = vadd.f32 %v1847, %v2146
    %v2148 = vpop.f32.mrf.mxu0
    %2149 = vdwg.mxu0
    %2150 = vmatpush.bf16.msra.mxu0 %v2056
    %2151 = vmatpush.bf16.msra.mxu0 %v2055
    %2152 = vmatpush.bf16.msra.mxu0 %v2054
    %2153 = vmatpush.bf16.msra.mxu0 %v2053
    %2154 = vmatpush.bf16.msra.mxu0 %v2052
    %2155 = vmatpush.bf16.msra.mxu0 %v2051
    %2156 = vmatpush.bf16.msra.mxu0 %v2050
    %2157 = vmatpush.bf16.msra.mxu0 %v2049
    %2158 = vmatmul.bf16.gmra.mxu0 %v1744
    %v2159 = vpop.f32.mrf.mxu0
    %v2160 = vadd.f32 %v2147, %v2159
    %v2161 = vpop.f32.mrf.mxu0
    %2162 = vdwg.mxu0
    %2163 = vmatpush.bf16.msra.mxu0 %v2064
    %2164 = vmatpush.bf16.msra.mxu0 %v2063
    %2165 = vmatpush.bf16.msra.mxu0 %v2062
    %2166 = vmatpush.bf16.msra.mxu0 %v2061
    %2167 = vmatpush.bf16.msra.mxu0 %v2060
    %2168 = vmatpush.bf16.msra.mxu0 %v2059
    %2169 = vmatpush.bf16.msra.mxu0 %v2058
    %2170 = vmatpush.bf16.msra.mxu0 %v2057
    %2171 = vmatmul.bf16.gmra.mxu0 %v1745
    %v2172 = vpop.f32.mrf.mxu0
    %v2173 = vadd.f32 %v2160, %v2172
    %v2174 = vpop.f32.mrf.mxu0
    %2175 = vdwg.mxu0
    %2176 = vmatpush.bf16.msra.mxu0 %v2072
    %2177 = vmatpush.bf16.msra.mxu0 %v2071
    %2178 = vmatpush.bf16.msra.mxu0 %v2070
    %2179 = vmatpush.bf16.msra.mxu0 %v2069
    %2180 = vmatpush.bf16.msra.mxu0 %v2068
    %2181 = vmatpush.bf16.msra.mxu0 %v2067
    %2182 = vmatpush.bf16.msra.mxu0 %v2066
    %2183 = vmatpush.bf16.msra.mxu0 %v2065
    %2184 = vmatmul.bf16.gmra.mxu0 %v1746
    %v2185 = vpop.f32.mrf.mxu0
    %v2186 = vadd.f32 %v2173, %v2185
    %v2187 = vpop.f32.mrf.mxu0
    %2188 = vdwg.mxu0
    %2189 = vmatpush.bf16.msra.mxu0 %v2080
    %2190 = vmatpush.bf16.msra.mxu0 %v2079
    %2191 = vmatpush.bf16.msra.mxu0 %v2078
    %2192 = vmatpush.bf16.msra.mxu0 %v2077
    %2193 = vmatpush.bf16.msra.mxu0 %v2076
    %2194 = vmatpush.bf16.msra.mxu0 %v2075
    %2195 = vmatpush.bf16.msra.mxu0 %v2074
    %2196 = vmatpush.bf16.msra.mxu0 %v2073
    %2197 = vmatmul.bf16.gmra.mxu0 %v1747
    %v2198 = vpop.f32.mrf.mxu0
    %v2199 = vadd.f32 %v2186, %v2198
    %v2200 = vpop.f32.mrf.mxu0
    %2201 = vdwg.mxu0
    %2202 = vmatpush.bf16.msra.mxu0 %v2088
    %2203 = vmatpush.bf16.msra.mxu0 %v2087
    %2204 = vmatpush.bf16.msra.mxu0 %v2086
    %2205 = vmatpush.bf16.msra.mxu0 %v2085
    %2206 = vmatpush.bf16.msra.mxu0 %v2084
    %2207 = vmatpush.bf16.msra.mxu0 %v2083
    %2208 = vmatpush.bf16.msra.mxu0 %v2082
    %2209 = vmatpush.bf16.msra.mxu0 %v2081
    %2210 = vmatmul.bf16.gmra.mxu0 %v1748
    %v2211 = vpop.f32.mrf.mxu0
    %v2212 = vadd.f32 %v2199, %v2211
    %v2213 = vpop.f32.mrf.mxu0
    %2214 = vdwg.mxu0
    %2215 = vst [vmem:[#allocation13] sm:$0xff] %v2212
    // Predicated region
    $region54: #{tpu_custom_call.1} parent=1 // pred_check
      _
    $region55: #{tpu_custom_call.1} parent=1 // pred_check_branch
      %2217 = sbr.rel (0) target = $region57
    $region56: #{tpu_custom_call.1} parent=1 // pred_region
      %2219 = vsyncadd [#allocation4], 0
      %s2221 = sshll.u32 [#allocation13], 4
      %s2222 = int_to_ptr.vmem [resolvable:$true] %s2221
      %s2223 = sshll.u32 %s7, 4
      %s2224 = int_to_ptr.hbm [resolvable:$true] %s2223
      %2226 = dma.vmem_to_hbm [thread:$0]  %s2222, 128, %s2224, [#allocation4]
    $region57: #{tpu_custom_call.1} parent=1 // pred_fallthru
      _
    // Predicated region
    $region58: #{tpu_custom_call.1} parent=1 // pred_check
      _
    $region59: #{tpu_custom_call.1} parent=1 // pred_check_branch
      %2228 = sbr.rel (0) target = $region61
    $region60: #{tpu_custom_call.1} parent=1 // pred_region
      %2230 = dma.done [#allocation4], 128
    $region61: #{tpu_custom_call.1} parent=1 // pred_fallthru
      _
    %2231 = vsyncpa [#allocation3], 1
    %2232 = vsyncpa [#allocation6], 1
    %2233 = vsyncpa [#allocation9], 1
    %2234 = vsyncpa [#allocation12], 1
    %2235 = vsyncpa [#allocation4], 1

</llo_original>
